<compile_context>
chip_gen: v7x
topology: tpu7x:2x2x1
jax: 0.10.0
libtpu: 0.0.40
codegen_flags: <defaults>
</compile_context>

<pallas_src>
import jax
import jax.numpy as jnp
from jax.experimental import pallas as pl
from jax.experimental.pallas import tpu as pltpu

# Module hyper-parameters (from TimeNetwork.__init__ defaults)
D = 2
W = 256
INPUT_CH = 1
OUTPUT_CH = 30
MULTIRES = 10
TIME_INPUT_CH = INPUT_CH * (1 + 2 * MULTIRES)  # 21

# Padded embedding width: 21 real lanes + 11 zero lanes (matches zero rows of W1)
K_PAD = 32


def _round_up(x, m):
    return (x + m - 1) // m * m


def timenet_kernel(t_ref, pe_ref, w1_ref, w2_ref, o_ref):
    # t_ref : (TB, 1)          f32 batch tile of times
    # pe_ref: (4, K_PAD)       f32 rows = [freq, phase, mask_t, mask_pe]
    # w1_ref: (K_PAD, W)       bf16 (rows 21..31 are zero)
    # w2_ref: (W, OUTPUT_CH)   bf16
    # o_ref : (TB, OUTPUT_CH)  f32
    t = t_ref[...]                                   # (TB, 1)
    pe = pe_ref[...]                                 # (4, 32)
    freq, phase = pe[0:1, :], pe[1:2, :]
    m_t, m_pe = pe[2:3, :], pe[3:4, :]

    # Positional encoding in f32 (2^9 * t needs full precision), laid out as an
    # aligned (TB, 32) slab with no lane concatenates:
    #   lane 0       : t
    #   lanes 1..10  : sin(2^k t)
    #   lanes 11..20 : cos(2^k t) = sin(2^k t + pi/2)
    #   lanes 21..31 : 0 (matches zero rows of W1)
    emb = t * m_t + jnp.sin(t * freq + phase) * m_pe            # (TB, 32) f32
    emb = emb.astype(jnp.bfloat16)

    # Bias-free MLP (tcnn CutlassMLP): bf16 MXU operands, f32 accumulation.
    h = jnp.maximum(
        jnp.dot(emb, w1_ref[...], preferred_element_type=jnp.float32), 0.0
    )                                                            # (TB, 256) f32
    h = h.astype(jnp.bfloat16)
    o_ref[...] = jnp.dot(h, w2_ref[...], preferred_element_type=jnp.float32)


def _pe_table():
    """(4, K_PAD) f32 table: rows = [freq, phase, mask_t, mask_pe]."""
    f = 2.0 ** jnp.arange(MULTIRES, dtype=jnp.float32)
    freq = jnp.zeros((K_PAD,), jnp.float32)
    freq = freq.at[1:1 + MULTIRES].set(f)
    freq = freq.at[1 + MULTIRES:1 + 2 * MULTIRES].set(f)
    phase = jnp.zeros((K_PAD,), jnp.float32)
    phase = phase.at[1 + MULTIRES:1 + 2 * MULTIRES].set(jnp.pi / 2)
    m_t = jnp.zeros((K_PAD,), jnp.float32).at[0].set(1.0)
    m_pe = jnp.zeros((K_PAD,), jnp.float32).at[1:1 + 2 * MULTIRES].set(1.0)
    return jnp.stack([freq, phase, m_t, m_pe], axis=0)


def time_network(t, w1, w2, *, max_batch_tile=2048):
    N = t.shape[0]
    assert t.shape == (N, INPUT_CH)
    assert w1.shape == (TIME_INPUT_CH, W)
    assert w2.shape == (W, OUTPUT_CH)

    # Host-side prep: bf16 weights; W1 zero-padded to the 32-lane embedding.
    w1p = jnp.zeros((K_PAD, W), jnp.bfloat16).at[:TIME_INPUT_CH, :].set(
        w1.astype(jnp.bfloat16))
    w2b = w2.astype(jnp.bfloat16)
    pe = _pe_table()

    # Batch tile: large (amortizes ~0.35us per grid step), capped for VMEM,
    # but at least 2 grid steps when possible so both v7x TensorCores get work
    # via the "parallel" grid axis.
    tile = max(8, min(max_batch_tile, _round_up(pl.cdiv(N, 2), 8)))
    n_pad = _round_up(N, tile)
    # Only the tiny (N,1) time input is padded (keeps edge-block compute on
    # valid data); the output keeps its exact (N, 30) shape and Pallas clips
    # the partial last output block -- no wrapper-side pad/slice copies.
    t_pad = jnp.pad(t, ((0, n_pad - N), (0, 0))) if n_pad != N else t
    grid = (n_pad // tile,)

    cost = pl.CostEstimate(
        flops=2 * n_pad * (K_PAD * W + W * OUTPUT_CH),
        transcendentals=n_pad * K_PAD,
        bytes_accessed=(n_pad * (INPUT_CH + OUTPUT_CH) * 4
                        + (K_PAD * W + W * OUTPUT_CH) * 2),
    )

    out = pl.pallas_call(
        timenet_kernel,
        out_shape=jax.ShapeDtypeStruct((N, OUTPUT_CH), jnp.float32),
        grid_spec=pltpu.PrefetchScalarGridSpec(
            num_scalar_prefetch=0,
            grid=grid,
            in_specs=[
                pl.BlockSpec((tile, INPUT_CH), lambda i: (i, 0)),
                pl.BlockSpec((4, K_PAD), lambda i: (0, 0)),
                pl.BlockSpec((K_PAD, W), lambda i: (0, 0)),
                pl.BlockSpec((W, OUTPUT_CH), lambda i: (0, 0)),
            ],
            out_specs=pl.BlockSpec((tile, OUTPUT_CH), lambda i: (i, 0)),
        ),
        compiler_params=pltpu.CompilerParams(
            dimension_semantics=("parallel",),
        ),
        cost_estimate=cost,
    )(t_pad, pe, w1p, w2b)

    return out


# --- references -------------------------------------------------------------
def reference_f32(t, w1, w2):
    freqs = (2.0 ** jnp.arange(MULTIRES, dtype=jnp.float32))[None, :]
    tf = t * freqs
    emb = jnp.concatenate([t, jnp.sin(tf), jnp.cos(tf)], axis=-1)
    h = jnp.maximum(emb @ w1, 0.0)
    return h @ w2


def reference_bf16(t, w1, w2):
    # Same bf16-operand / f32-accum arithmetic as the kernel.
    freqs = (2.0 ** jnp.arange(MULTIRES, dtype=jnp.float32))[None, :]
    tf = t * freqs
    emb = jnp.concatenate([t, jnp.sin(tf), jnp.cos(tf)], axis=-1).astype(jnp.bfloat16)
    h = jnp.maximum(
        jnp.dot(emb, w1.astype(jnp.bfloat16), preferred_element_type=jnp.float32),
        0.0)
    return jnp.dot(h.astype(jnp.bfloat16), w2.astype(jnp.bfloat16),
                   preferred_element_type=jnp.float32)


if __name__ == "__main__":
    key = jax.random.PRNGKey(0)
    k_t, k_w1, k_w2 = jax.random.split(key, 3)

    N = 250  # non-multiple of the tile: exercises the clipped edge block
    t = jax.random.uniform(k_t, (N, INPUT_CH), dtype=jnp.float32)

    # Deterministic synthetic weights (He-ish scaling); CutlassMLP has no biases.
    w1 = jax.random.normal(k_w1, (TIME_INPUT_CH, W), dtype=jnp.float32) * (
        2.0 / TIME_INPUT_CH) ** 0.5
    w2 = jax.random.normal(k_w2, (W, OUTPUT_CH), dtype=jnp.float32) * (2.0 / W) ** 0.5

    out = jax.block_until_ready(time_network(t, w1, w2))
    assert out.shape == (N, OUTPUT_CH)

    ref_bf = reference_bf16(t, w1, w2)   # tight: same precision recipe
    ref_f32 = reference_f32(t, w1, w2)   # loose: full-f32 semantics
    assert jnp.allclose(out, ref_bf, rtol=1e-2, atol=1e-2), (
        float(jnp.max(jnp.abs(out - ref_bf))))
    assert jnp.allclose(out, ref_f32, rtol=5e-2, atol=5e-2), (
        float(jnp.max(jnp.abs(out - ref_f32))))

    print("KERNEL_OK")
</pallas_src>

<mosaic_0001>
module attributes {stable_mosaic.version = 11 : i64} {
  func.func @timenet_kernel(%arg0: i32, %arg1: memref<128x1xf32, #tpu.memory_space<vmem>>, %arg2: memref<4x32xf32, #tpu.memory_space<vmem>>, %arg3: memref<32x256xbf16, #tpu.memory_space<vmem>>, %arg4: memref<256x30xbf16, #tpu.memory_space<vmem>>, %arg5: memref<128x30xf32, #tpu.memory_space<vmem>>) attributes {dimension_semantics = [#tpu.dimension_semantics<parallel>], iteration_bounds = array<i64: 2>, scalar_prefetch = 0 : i64, scratch_operands = 0 : i64, tpu.core_type = #tpu.core_type<tc>, window_params = [{transform_indices = @transform_0, window_bounds = array<i64: 128, 1>}, {pipeline_mode = #tpu.pipeline_mode<synchronous>, transform_indices = @transform_1, window_bounds = array<i64: 4, 32>}, {pipeline_mode = #tpu.pipeline_mode<synchronous>, transform_indices = @transform_2, window_bounds = array<i64: 32, 256>}, {pipeline_mode = #tpu.pipeline_mode<synchronous>, transform_indices = @transform_3, window_bounds = array<i64: 256, 30>}, {transform_indices = @transform_4, window_bounds = array<i64: 128, 30>}]} {
    %c0 = arith.constant 0 : index
    %c0_0 = arith.constant 0 : index
    %0 = vector.load %arg1[%c0, %c0_0] : memref<128x1xf32, #tpu.memory_space<vmem>>, vector<128x1xf32>
    %c0_1 = arith.constant 0 : index
    %c0_2 = arith.constant 0 : index
    %1 = vector.load %arg2[%c0_1, %c0_2] : memref<4x32xf32, #tpu.memory_space<vmem>>, vector<4x32xf32>
    %2 = vector.extract_strided_slice %1 {offsets = [0, 0], sizes = [1, 32], strides = [1, 1]} : vector<4x32xf32> to vector<1x32xf32>
    %3 = vector.extract_strided_slice %1 {offsets = [1, 0], sizes = [1, 32], strides = [1, 1]} : vector<4x32xf32> to vector<1x32xf32>
    %4 = vector.extract_strided_slice %1 {offsets = [2, 0], sizes = [1, 32], strides = [1, 1]} : vector<4x32xf32> to vector<1x32xf32>
    %5 = vector.extract_strided_slice %1 {offsets = [3, 0], sizes = [1, 32], strides = [1, 1]} : vector<4x32xf32> to vector<1x32xf32>
    %6 = vector.broadcast %0 : vector<128x1xf32> to vector<128x32xf32>
    %7 = vector.broadcast %4 : vector<1x32xf32> to vector<128x32xf32>
    %8 = arith.mulf %6, %7 : vector<128x32xf32>
    %9 = vector.broadcast %0 : vector<128x1xf32> to vector<128x32xf32>
    %10 = vector.broadcast %2 : vector<1x32xf32> to vector<128x32xf32>
    %11 = arith.mulf %9, %10 : vector<128x32xf32>
    %12 = vector.broadcast %3 : vector<1x32xf32> to vector<128x32xf32>
    %13 = arith.addf %11, %12 : vector<128x32xf32>
    %14 = math.sin %13 : vector<128x32xf32>
    %15 = vector.broadcast %5 : vector<1x32xf32> to vector<128x32xf32>
    %16 = arith.mulf %14, %15 : vector<128x32xf32>
    %17 = arith.addf %8, %16 : vector<128x32xf32>
    %18 = arith.truncf %17 : vector<128x32xf32> to vector<128x32xbf16>
    %c0_3 = arith.constant 0 : index
    %c0_4 = arith.constant 0 : index
    %19 = vector.load %arg3[%c0_3, %c0_4] : memref<32x256xbf16, #tpu.memory_space<vmem>>, vector<32x256xbf16>
    %cst = arith.constant dense<0.000000e+00> : vector<128x256xf32>
    %20 = tpu.matmul %18, %19, %cst {dimension_numbers = #tpu.dot_dimension_numbers<[1], [0], [0], [1], [0, 0, 1, 1], [], []>} : vector<128x32xbf16>, vector<32x256xbf16>, vector<128x256xf32> -> vector<128x256xf32>
    %cst_5 = arith.constant 0.000000e+00 : f32
    %21 = vector.broadcast %cst_5 : f32 to vector<128x256xf32>
    %22 = arith.maximumf %20, %21 : vector<128x256xf32>
    %23 = arith.truncf %22 : vector<128x256xf32> to vector<128x256xbf16>
    %c0_6 = arith.constant 0 : index
    %c0_7 = arith.constant 0 : index
    %24 = vector.load %arg4[%c0_6, %c0_7] : memref<256x30xbf16, #tpu.memory_space<vmem>>, vector<256x30xbf16>
    %cst_8 = arith.constant dense<0.000000e+00> : vector<128x30xf32>
    %25 = tpu.matmul %23, %24, %cst_8 {dimension_numbers = #tpu.dot_dimension_numbers<[1], [0], [0], [1], [0, 0, 1, 1], [], []>} : vector<128x256xbf16>, vector<256x30xbf16>, vector<128x30xf32> -> vector<128x30xf32>
    %c0_9 = arith.constant 0 : index
    %c0_10 = arith.constant 0 : index
    %26 = vector.load %arg5[%c0_9, %c0_10] : memref<128x30xf32, #tpu.memory_space<vmem>>, vector<128x30xf32>
    tpu.vector_store %arg5[%c0_9, %c0_10], %25 {strides = array<i32>} : memref<128x30xf32, #tpu.memory_space<vmem>>, vector<128x30xf32>,
    return
  }
  func.func @transform_0(%arg0: i32) -> (i32, i32) {
    %c0_i32 = arith.constant 0 : i32
    %c0_i32_0 = arith.constant 0 : i32
    return %arg0, %c0_i32 : i32, i32
  }
  func.func @transform_1(%arg0: i32) -> (i32, i32) {
    %c0_i32 = arith.constant 0 : i32
    %c0_i32_0 = arith.constant 0 : i32
    %c0_i32_1 = arith.constant 0 : i32
    return %c0_i32, %c0_i32_0 : i32, i32
  }
  func.func @transform_2(%arg0: i32) -> (i32, i32) {
    %c0_i32 = arith.constant 0 : i32
    %c0_i32_0 = arith.constant 0 : i32
    %c0_i32_1 = arith.constant 0 : i32
    return %c0_i32, %c0_i32_0 : i32, i32
  }
  func.func @transform_3(%arg0: i32) -> (i32, i32) {
    %c0_i32 = arith.constant 0 : i32
    %c0_i32_0 = arith.constant 0 : i32
    %c0_i32_1 = arith.constant 0 : i32
    return %c0_i32, %c0_i32_0 : i32, i32
  }
  func.func @transform_4(%arg0: i32) -> (i32, i32) {
    %c0_i32 = arith.constant 0 : i32
    %c0_i32_0 = arith.constant 0 : i32
    return %arg0, %c0_i32 : i32, i32
  }
}

</mosaic_0001>

<llo_original>
// kernel: tpu_custom_call.1
$region0: #{tpu_custom_call.1}
  #allocation0 [shape = 'u32[]', space=smem, size = 0x4, offset = 0x4, fixed_abs, tag = 'smem constant byte address 0x4 - core index']
  #allocation1 [shape = 'u32[144,128]{1,0:T(1,128)}', space=vmem, size = 0x12000, scoped, tag = 'internal scratch']
  %s0 = inlined_call_operand.vmem [shape: f32[256,1], index: 0, kind: input, shape index: {}]
  %s1 = inlined_call_operand.vmem [shape: f32[4,32], index: 1, kind: input, shape index: {}]
  %s2 = inlined_call_operand.vmem [shape: bf16[32,256], index: 2, kind: input, shape index: {}]
  %s3 = inlined_call_operand.vmem [shape: bf16[256,30], index: 3, kind: input, shape index: {}]
  %s4 = inlined_call_operand.vmem [shape: f32[250,30], index: 4, kind: output, shape index: {}]
  %s5 = sld [smem:[#allocation0]]
  $region49: #{tpu_custom_call.1} parent=0
    _
  %s7 = ssub.s32 1, %s5
  %s8 = scalar_select 0, %s7, %s5
  loop: start=0, step=1, limit=4
  $region2: #{tpu_custom_call.1} parent=0 // loop_pre_header
    _
  $region3: #{tpu_custom_call.1} parent=0 // loop_header
    %s10 = sphi 0, %s14
    %p11 = scmp.ge.s32.totalorder %s10, 4
    %s20 = sphi 0, %s22
    %s23 = sphi 0, %s20
    %s24 = sphi 0, %s23
    %s40 = sphi 0, %s24
    %s44 = sphi 0, %s44
    %s46 = sphi 0, %s44
    %s47 = sphi 0, %s46
    %s61 = sphi 0, %s47
    %s65 = sphi 0, %s65
    %s67 = sphi 0, %s65
    %s68 = sphi 0, %s67
    %s82 = sphi 0, %s68
    %s86 = sphi 0, %s86
    %s88 = sphi 0, %s86
    %s89 = sphi 0, %s88
    %s103 = sphi 0, %s89
    %s109 = sphi 0, %s111
    %s112 = sphi 0, %s109
    %s113 = sphi 0, %s112
    %s129 = sphi 0, %s113
  $region4: #{tpu_custom_call.1} parent=0 // loop_header_branch
    %13 = sbr.rel (%p11) target = $region8
  $region5: #{tpu_custom_call.1} parent=0 // loop_body
    %s15 = ssub.s32 %s10, 1
    %s16 = ssub.s32 %s10, 2
    %s17 = sadd.s32 %s10, 1
    %s18 = ssub.s32 %s10, %s17
    %p19 = scmp.eq.s32.totalorder %s18, 0
    %s21 = sadd.s32 %s20, 1
    %s22 = scalar_select %p19, %s20, %s21
    %p25 = pneg %p19
    %p26 = scmp.eq.s32.totalorder %s10, 1
    %p27 = por %p25, %p26
    %p28 = scmp.ne.s32.totalorder %s20, %s23
    %p29 = scmp.eq.s32.totalorder %s10, 0
    %p30 = por %p28, %p29
    %p31 = scmp.ne.s32.totalorder %s20, %s23
    %p32 = scmp.eq.s32.totalorder %s15, 1
    %p33 = por %p31, %p32
    %p34 = scmp.ne.s32.totalorder %s23, %s24
    %p35 = scmp.eq.s32.totalorder %s15, 0
    %p36 = por %p34, %p35
    %p37 = scmp.ne.s32.totalorder %s23, %s24
    %p38 = scmp.eq.s32.totalorder %s16, 1
    %p39 = por %p37, %p38
    %p41 = scmp.ne.s32.totalorder %s24, %s40
    %p42 = scmp.eq.s32.totalorder %s16, 0
    %p43 = por %p41, %p42
    %s45 = sadd.s32 %s44, 1
    %p48 = scmp.eq.s32.totalorder %s10, 1
    %p49 = scmp.ne.s32.totalorder %s44, %s46
    %p50 = scmp.eq.s32.totalorder %s10, 0
    %p51 = por %p49, %p50
    %p52 = scmp.ne.s32.totalorder %s44, %s46
    %p53 = scmp.eq.s32.totalorder %s15, 1
    %p54 = por %p52, %p53
    %p55 = scmp.ne.s32.totalorder %s46, %s47
    %p56 = scmp.eq.s32.totalorder %s15, 0
    %p57 = por %p55, %p56
    %p58 = scmp.ne.s32.totalorder %s46, %s47
    %p59 = scmp.eq.s32.totalorder %s16, 1
    %p60 = por %p58, %p59
    %p62 = scmp.ne.s32.totalorder %s47, %s61
    %p63 = scmp.eq.s32.totalorder %s16, 0
    %p64 = por %p62, %p63
    %s66 = sadd.s32 %s65, 1
    %p69 = scmp.eq.s32.totalorder %s10, 1
    %p70 = scmp.ne.s32.totalorder %s65, %s67
    %p71 = scmp.eq.s32.totalorder %s10, 0
    %p72 = por %p70, %p71
    %p73 = scmp.ne.s32.totalorder %s65, %s67
    %p74 = scmp.eq.s32.totalorder %s15, 1
    %p75 = por %p73, %p74
    %p76 = scmp.ne.s32.totalorder %s67, %s68
    %p77 = scmp.eq.s32.totalorder %s15, 0
    %p78 = por %p76, %p77
    %p79 = scmp.ne.s32.totalorder %s67, %s68
    %p80 = scmp.eq.s32.totalorder %s16, 1
    %p81 = por %p79, %p80
    %p83 = scmp.ne.s32.totalorder %s68, %s82
    %p84 = scmp.eq.s32.totalorder %s16, 0
    %p85 = por %p83, %p84
    %s87 = sadd.s32 %s86, 1
    %p90 = scmp.eq.s32.totalorder %s10, 1
    %p91 = scmp.ne.s32.totalorder %s86, %s88
    %p92 = scmp.eq.s32.totalorder %s10, 0
    %p93 = por %p91, %p92
    %p94 = scmp.ne.s32.totalorder %s86, %s88
    %p95 = scmp.eq.s32.totalorder %s15, 1
    %p96 = por %p94, %p95
    %p97 = scmp.ne.s32.totalorder %s88, %s89
    %p98 = scmp.eq.s32.totalorder %s15, 0
    %p99 = por %p97, %p98
    %p100 = scmp.ne.s32.totalorder %s88, %s89
    %p101 = scmp.eq.s32.totalorder %s16, 1
    %p102 = por %p100, %p101
    %p104 = scmp.ne.s32.totalorder %s89, %s103
    %p105 = scmp.eq.s32.totalorder %s16, 0
    %p106 = por %p104, %p105
    %s107 = ssub.s32 %s10, %s17
    %p108 = scmp.eq.s32.totalorder %s107, 0
    %s110 = sadd.s32 %s109, 1
    %s111 = scalar_select %p108, %s109, %s110
    %p114 = pneg %p108
    %p115 = scmp.eq.s32.totalorder %s10, 1
    %p116 = por %p114, %p115
    %p117 = scmp.ne.s32.totalorder %s109, %s112
    %p118 = scmp.eq.s32.totalorder %s10, 0
    %p119 = por %p117, %p118
    %p120 = scmp.ne.s32.totalorder %s109, %s112
    %p121 = scmp.eq.s32.totalorder %s15, 1
    %p122 = por %p120, %p121
    %p123 = scmp.ne.s32.totalorder %s112, %s113
    %p124 = scmp.eq.s32.totalorder %s15, 0
    %p125 = por %p123, %p124
    %p126 = scmp.ne.s32.totalorder %s112, %s113
    %p127 = scmp.eq.s32.totalorder %s16, 1
    %p128 = por %p126, %p127
    %p130 = scmp.ne.s32.totalorder %s113, %s129
    %p131 = scmp.eq.s32.totalorder %s16, 0
    %p132 = por %p130, %p131
    %p133 = scmp.le.s32.totalorder 1, %s10
    %p134 = scmp.lt.s32.totalorder %s10, 3
    %p135 = pnand %p133, %p134
    %p136 = pneg %p135
    // Predicated region
    $region9: #{tpu_custom_call.1} parent=5 // pred_check
      _
    $region10: #{tpu_custom_call.1} parent=5 // pred_check_branch
      %138 = sbr.rel (%p135) target = $region12
    $region11: #{tpu_custom_call.1} parent=5 // pred_region
      %s139 = ssub.s32 %s10, 1
      // Predicated region
      $region13: #{tpu_custom_call.1} parent=11 // pred_check
        %p140 = pneg %p57
      $region14: #{tpu_custom_call.1} parent=11 // pred_check_branch
        %142 = sbr.rel (%p140) target = $region16
      $region15: #{tpu_custom_call.1} parent=11 // pred_region
        _
      $region16: #{tpu_custom_call.1} parent=11 // pred_fallthru
        _
      // Predicated region
      $region17: #{tpu_custom_call.1} parent=11 // pred_check
        %p143 = pneg %p78
      $region18: #{tpu_custom_call.1} parent=11 // pred_check_branch
        %145 = sbr.rel (%p143) target = $region20
      $region19: #{tpu_custom_call.1} parent=11 // pred_region
        _
      $region20: #{tpu_custom_call.1} parent=11 // pred_fallthru
        _
      // Predicated region
      $region21: #{tpu_custom_call.1} parent=11 // pred_check
        %p146 = pneg %p99
      $region22: #{tpu_custom_call.1} parent=11 // pred_check_branch
        %148 = sbr.rel (%p146) target = $region24
      $region23: #{tpu_custom_call.1} parent=11 // pred_region
        _
      $region24: #{tpu_custom_call.1} parent=11 // pred_fallthru
        _
    $region12: #{tpu_custom_call.1} parent=5 // pred_fallthru
      _
    %p149 = scmp.lt.s32.totalorder %s10, 2
    // Predicated region
    $region25: #{tpu_custom_call.1} parent=5 // pred_check
      %p150 = pneg %p149
    $region26: #{tpu_custom_call.1} parent=5 // pred_check_branch
      %152 = sbr.rel (%p150) target = $region28
    $region27: #{tpu_custom_call.1} parent=5 // pred_region
      // Predicated region
      $region29: #{tpu_custom_call.1} parent=27 // pred_check
        %p153 = pneg %p30
      $region30: #{tpu_custom_call.1} parent=27 // pred_check_branch
        %155 = sbr.rel (%p153) target = $region32
      $region31: #{tpu_custom_call.1} parent=27 // pred_region
        %s156 = smul.u32 16, %s10
        %p157 = scmp.lt.s32.totalorder %s156, 31
        %s158 = scalar_select %p157, %s156, 31
        %s159 = smul.addr %s158, 8
        %s160 = scalar_lea.vmem %s0, %s159
        %s161 = smul.u32 16, %s10
      $region32: #{tpu_custom_call.1} parent=27 // pred_fallthru
        _
    $region28: #{tpu_custom_call.1} parent=5 // pred_fallthru
      _
    %p162 = scmp.le.s32.totalorder 1, %s10
    %p163 = scmp.lt.s32.totalorder %s10, 3
    %p164 = pnand %p162, %p163
    %p165 = pneg %p164
    // Predicated region
    $region33: #{tpu_custom_call.1} parent=5 // pred_check
      _
    $region34: #{tpu_custom_call.1} parent=5 // pred_check_branch
      %167 = sbr.rel (%p164) target = $region36
    $region35: #{tpu_custom_call.1} parent=5 // pred_region
      %s168 = ssub.s32 %s10, 1
      %s169 = smul.u32 16, %s15
      %p170 = scmp.lt.s32.totalorder %s169, 31
      %s171 = scalar_select %p170, %s169, 31
      %s172 = smul.addr %s171, 8
      %s173 = scalar_lea.vmem %s0, %s172
      %p174 = pneg %p36
      %p175 = pneg %p33
      %p176 = pneg %p57
      %p177 = pneg %p54
      %p178 = pneg %p78
      %p179 = pneg %p75
      %p180 = pneg %p99
      %p181 = pneg %p96
      %p182 = pneg %p125
      %p183 = pneg %p122
      %s184 = smul.u32 16, %s15
      %p185 = scmp.lt.s32.totalorder %s184, 31
      %s186 = scalar_select %p185, %s184, 31
      %s187 = smul.addr %s186, 8
      %s188 = scalar_lea.vmem %s4, %s187
      %s189 = smul.u32 16, %s15
      %p190 = scmp.lt.s32.totalorder %s189, 31
      %s191 = scalar_select %p190, %s189, 31
      %s192 = smul.addr %s191, 8
      %s193 = scalar_lea.vmem %s0, %s192
      %s194 = smul.u32 16, %s15
      %s195 = smul.u32 16, %s15
      %p196 = scmp.lt.s32.totalorder %s195, 31
      %s197 = scalar_select %p196, %s195, 31
      %s198 = smul.addr %s197, 8
      %s199 = scalar_lea.vmem %s4, %s198
      %s200 = smul.u32 16, %s15
      %v202 = vld [vmem:[%s193] sm:$0xff]
      %v203 = vld [vmem:[%s193 + $0x8] sm:$0xff]
      %v204 = vld [vmem:[%s193 + $0x10] sm:$0xff]
      %v205 = vld [vmem:[%s193 + $0x18] sm:$0xff]
      %v206 = vld [vmem:[%s193 + $0x20] sm:$0xff]
      %v207 = vld [vmem:[%s193 + $0x28] sm:$0xff]
      %v208 = vld [vmem:[%s193 + $0x30] sm:$0xff]
      %v209 = vld [vmem:[%s193 + $0x38] sm:$0xff]
      %v210 = vld [vmem:[%s193 + $0x40] sm:$0xff]
      %v211 = vld [vmem:[%s193 + $0x48] sm:$0xff]
      %v212 = vld [vmem:[%s193 + $0x50] sm:$0xff]
      %v213 = vld [vmem:[%s193 + $0x58] sm:$0xff]
      %v214 = vld [vmem:[%s193 + $0x60] sm:$0xff]
      %v215 = vld [vmem:[%s193 + $0x68] sm:$0xff]
      %v216 = vld [vmem:[%s193 + $0x70] sm:$0xff]
      %v217 = vld [vmem:[%s193 + $0x78] sm:$0xff]
      %v218 = vld [vmem:[%s1] sm:$0xf]
      %220 = vset.pattern.permute.xlu0 0
      %221 = vperm.xlu0 %220, %v202
      %v222 = vpop.permute.xlu0 %221
      %225 = vset.pattern.permute.xlu0 0
      %226 = vperm.xlu0 %225, %v203
      %v227 = vpop.permute.xlu0 %226
      %230 = vset.pattern.permute.xlu0 0
      %231 = vperm.xlu0 %230, %v204
      %v232 = vpop.permute.xlu0 %231
      %235 = vset.pattern.permute.xlu0 0
      %236 = vperm.xlu0 %235, %v205
      %v237 = vpop.permute.xlu0 %236
      %240 = vset.pattern.permute.xlu0 0
      %241 = vperm.xlu0 %240, %v206
      %v242 = vpop.permute.xlu0 %241
      %245 = vset.pattern.permute.xlu0 0
      %246 = vperm.xlu0 %245, %v207
      %v247 = vpop.permute.xlu0 %246
      %250 = vset.pattern.permute.xlu0 0
      %251 = vperm.xlu0 %250, %v208
      %v252 = vpop.permute.xlu0 %251
      %255 = vset.pattern.permute.xlu0 0
      %256 = vperm.xlu0 %255, %v209
      %v257 = vpop.permute.xlu0 %256
      %260 = vset.pattern.permute.xlu0 0
      %261 = vperm.xlu0 %260, %v210
      %v262 = vpop.permute.xlu0 %261
      %265 = vset.pattern.permute.xlu0 0
      %266 = vperm.xlu0 %265, %v211
      %v267 = vpop.permute.xlu0 %266
      %270 = vset.pattern.permute.xlu0 0
      %271 = vperm.xlu0 %270, %v212
      %v272 = vpop.permute.xlu0 %271
      %275 = vset.pattern.permute.xlu0 0
      %276 = vperm.xlu0 %275, %v213
      %v277 = vpop.permute.xlu0 %276
      %280 = vset.pattern.permute.xlu0 0
      %281 = vperm.xlu0 %280, %v214
      %v282 = vpop.permute.xlu0 %281
      %285 = vset.pattern.permute.xlu0 0
      %286 = vperm.xlu0 %285, %v215
      %v287 = vpop.permute.xlu0 %286
      %290 = vset.pattern.permute.xlu0 0
      %291 = vperm.xlu0 %290, %v216
      %v292 = vpop.permute.xlu0 %291
      %295 = vset.pattern.permute.xlu0 0
      %296 = vperm.xlu0 %295, %v217
      %v297 = vpop.permute.xlu0 %296
      %v299 = vlaneseq
      %v300 = vshrl.u32 %v299, 7
      %v301 = vsub.s32 2, %v300
      %v302 = vrot.slane %v218, %v301
      %v303 = vmul.f32 %v222, %v302
      %v304 = vmul.f32 %v227, %v302
      %v305 = vmul.f32 %v232, %v302
      %v306 = vmul.f32 %v237, %v302
      %v307 = vmul.f32 %v242, %v302
      %v308 = vmul.f32 %v247, %v302
      %v309 = vmul.f32 %v252, %v302
      %v310 = vmul.f32 %v257, %v302
      %v311 = vmul.f32 %v262, %v302
      %v312 = vmul.f32 %v267, %v302
      %v313 = vmul.f32 %v272, %v302
      %v314 = vmul.f32 %v277, %v302
      %v315 = vmul.f32 %v282, %v302
      %v316 = vmul.f32 %v287, %v302
      %v317 = vmul.f32 %v292, %v302
      %v318 = vmul.f32 %v297, %v302
      %v319 = vlaneseq
      %v320 = vshrl.u32 %v319, 7
      %v321 = vsub.s32 0, %v320
      %v322 = vrot.slane %v218, %v321
      %v323 = vmul.f32 %v222, %v322
      %v324 = vmul.f32 %v227, %v322
      %v325 = vmul.f32 %v232, %v322
      %v326 = vmul.f32 %v237, %v322
      %v327 = vmul.f32 %v242, %v322
      %v328 = vmul.f32 %v247, %v322
      %v329 = vmul.f32 %v252, %v322
      %v330 = vmul.f32 %v257, %v322
      %v331 = vmul.f32 %v262, %v322
      %v332 = vmul.f32 %v267, %v322
      %v333 = vmul.f32 %v272, %v322
      %v334 = vmul.f32 %v277, %v322
      %v335 = vmul.f32 %v282, %v322
      %v336 = vmul.f32 %v287, %v322
      %v337 = vmul.f32 %v292, %v322
      %v338 = vmul.f32 %v297, %v322
      %v339 = vlaneseq
      %v340 = vshrl.u32 %v339, 7
      %v341 = vsub.s32 1, %v340
      %v342 = vrot.slane %v218, %v341
      %v343 = vadd.f32 %v323, %v342
      %v344 = vadd.f32 %v324, %v342
      %v345 = vadd.f32 %v325, %v342
      %v346 = vadd.f32 %v326, %v342
      %v347 = vadd.f32 %v327, %v342
      %v348 = vadd.f32 %v328, %v342
      %v349 = vadd.f32 %v329, %v342
      %v350 = vadd.f32 %v330, %v342
      %v351 = vadd.f32 %v331, %v342
      %v352 = vadd.f32 %v332, %v342
      %v353 = vadd.f32 %v333, %v342
      %v354 = vadd.f32 %v334, %v342
      %v355 = vadd.f32 %v335, %v342
      %v356 = vadd.f32 %v336, %v342
      %v357 = vadd.f32 %v337, %v342
      %v358 = vadd.f32 %v338, %v342
      %v359 = vand.u32 2147483647, %v343
      %vm360 = vcmp.le.f32.partialorder %v359, 0.7853982
      %vm361 = vcmp.lt.s32.totalorder %v343, 0
      %v362 = vand.u32 %v343, 2139095040
      %v363 = vshrl.u32 %v362, 23
      %v364 = vsub.s32 %v363, 127
      %v365 = vand.u32 2147483647, %v343
      %v366 = vand.u32 %v365, 8388607
      %v367 = vor.u32 %v366, 8388608
      %v368 = vsub.s32 0, %v367
      %v369 = vadd.s32 %v364, 1
      %vm370 = vcmp.gt.s32.totalorder %v369, 0
      %v371 = vsel %vm370, %v369, 0
      %v372 = vshrl.u32 %v371, 5
      %v373 = vand.u32 %v371, 31
      %v374 = vsub.s32 32, %v373
      %v375 = vshrl.u32 683565275, %v374
      %v376 = vshll.u32 683565275, %v373
      %v377 = vshrl.u32 2475754826, %v374
      %v378 = vor.u32 %v376, %v377
      %v379 = vshll.u32 2475754826, %v373
      %v380 = vshrl.u32 2131351028, %v374
      %v381 = vor.u32 %v379, %v380
      %v382 = vshll.u32 2131351028, %v373
      %v383 = vshrl.u32 2102212464, %v374
      %v384 = vor.u32 %v382, %v383
      %v385 = vshll.u32 2102212464, %v373
      %v386 = vshrl.u32 920167782, %v374
      %v387 = vor.u32 %v385, %v386
      %v388 = vshll.u32 920167782, %v373
      %v389 = vshrl.u32 1326507024, %v374
      %v390 = vor.u32 %v388, %v389
      %vm391 = vcmp.lt.s32.totalorder %v372, 1
      %vm392 = vcmp.lt.s32.totalorder %v372, 2
      %vm393 = vcmp.lt.s32.totalorder %v372, 3
      %vm394 = vcmp.lt.s32.totalorder %v372, 4
      %v395 = vsel %vm391, %v375, %v378
      %v396 = vsel %vm394, %v384, 2102212464
      %v397 = vsel %vm393, %v381, %v396
      %v398 = vsel %vm392, %v395, %v397
      %v399 = vsel %vm391, %v378, %v381
      %v400 = vsel %vm394, %v387, 920167782
      %v401 = vsel %vm393, %v384, %v400
      %v402 = vsel %vm392, %v399, %v401
      %v403 = vsel %vm391, %v381, %v384
      %v404 = vsel %vm394, %v390, 1326507024
      %v405 = vsel %vm393, %v387, %v404
      %v406 = vsel %vm392, %v403, %v405
      %v407 = vshll.u32 %v367, 8
      %v408 = vmul.u32.u64.compose %v407, %v406
      %v409 = vextract.low.u32 %v408
      %v410 = vextract.high.u32 %v408
      %v411 = vmul.u32.u64.compose %v407, %v402
      %v412 = vextract.low.u32 %v411
      %v413 = vextract.high.u32 %v411
      %v414 = vmul.u32 %v407, %v398
      %v415 = vadd.s32 %v410, %v412
      %vm416 = vc.u32 %v410, %v412
      %v417 = vadd.s32 %v413, 1
      %v418 = vsel %vm416, %v417, %v413
      %v419 = vadd.s32 %v414, %v418
      %v420 = vadd.s32 %v419, 536870912
      %v421 = vshrl.u32 %v420, 30
      %v422 = vshll.u32 %v421, 30
      %v423 = vsub.s32 %v419, %v422
      %vm424 = vcmp.lt.s32.totalorder %v423, 0
      %v425 = vsub.s32 0, %v423
      %v426 = vsel %vm424, %v425, %v423
      %v427 = vclz %v426
      %v428 = vsub.s32 %v427, 2
      %vm429 = vcmp.gt.s32.totalorder 0, %v428
      %v430 = vsel %vm429, 0, %v428
      %v431 = vsub.s32 32, %v430
      %v432 = vshll.u32 %v423, %v430
      %v433 = vshrl.u32 %v415, %v431
      %v434 = vor.u32 %v432, %v433
      %v435 = vsub.s32 4294967266, %v430
      %v436 = vadd.s32 %v435, 127
      %v437 = vshll.u32 %v436, 23
      %v438 = vor.u32 4788187, %v437
      %v439 = vand.u32 2147483647, %v438
      %v441 = vcvt.s32.f32 %v434
      %v442 = vmul.f32 %v441, %v439
      %v443 = vxor.u32 %v442, 2147483648
      %v444 = vsel %vm361, %v443, %v442
      %v445 = vsub.s32 4, %v421
      %v446 = vsel %vm361, %v445, %v421
      %v447 = vsel %vm360, %v343, %v444
      %v448 = vsel %vm360, 0, %v446
      %v449 = vcosq.f32.pop %v447
      %v450 = vsinq.f32.pop %v447
      %vm451 = vweird.f32 %v343
      %v452 = vadd.s32 %v448, 3
      %v453 = vand.u32 %v452, 3
      %vm454 = vcmp.lt.s32.totalorder %v453, 2
      %vm455 = vcmp.eq.s32.totalorder %v453, 0
      %v456 = vxor.u32 %v450, 2147483648
      %v457 = vsel %vm455, %v449, %v456
      %vm458 = vcmp.eq.s32.totalorder %v453, 2
      %v459 = vxor.u32 %v449, 2147483648
      %v460 = vsel %vm458, %v459, %v450
      %v461 = vsel %vm454, %v457, %v460
      %v462 = vsel %vm451, nan, %v461
      %v463 = vand.u32 2147483647, %v344
      %vm464 = vcmp.le.f32.partialorder %v463, 0.7853982
      %vm465 = vcmp.lt.s32.totalorder %v344, 0
      %v466 = vand.u32 %v344, 2139095040
      %v467 = vshrl.u32 %v466, 23
      %v468 = vsub.s32 %v467, 127
      %v469 = vand.u32 2147483647, %v344
      %v470 = vand.u32 %v469, 8388607
      %v471 = vor.u32 %v470, 8388608
      %v472 = vsub.s32 0, %v471
      %v473 = vadd.s32 %v468, 1
      %vm474 = vcmp.gt.s32.totalorder %v473, 0
      %v475 = vsel %vm474, %v473, 0
      %v476 = vshrl.u32 %v475, 5
      %v477 = vand.u32 %v475, 31
      %v478 = vsub.s32 32, %v477
      %v479 = vshrl.u32 683565275, %v478
      %v480 = vshll.u32 683565275, %v477
      %v481 = vshrl.u32 2475754826, %v478
      %v482 = vor.u32 %v480, %v481
      %v483 = vshll.u32 2475754826, %v477
      %v484 = vshrl.u32 2131351028, %v478
      %v485 = vor.u32 %v483, %v484
      %v486 = vshll.u32 2131351028, %v477
      %v487 = vshrl.u32 2102212464, %v478
      %v488 = vor.u32 %v486, %v487
      %v489 = vshll.u32 2102212464, %v477
      %v490 = vshrl.u32 920167782, %v478
      %v491 = vor.u32 %v489, %v490
      %v492 = vshll.u32 920167782, %v477
      %v493 = vshrl.u32 1326507024, %v478
      %v494 = vor.u32 %v492, %v493
      %vm495 = vcmp.lt.s32.totalorder %v476, 1
      %vm496 = vcmp.lt.s32.totalorder %v476, 2
      %vm497 = vcmp.lt.s32.totalorder %v476, 3
      %vm498 = vcmp.lt.s32.totalorder %v476, 4
      %v499 = vsel %vm495, %v479, %v482
      %v500 = vsel %vm498, %v488, 2102212464
      %v501 = vsel %vm497, %v485, %v500
      %v502 = vsel %vm496, %v499, %v501
      %v503 = vsel %vm495, %v482, %v485
      %v504 = vsel %vm498, %v491, 920167782
      %v505 = vsel %vm497, %v488, %v504
      %v506 = vsel %vm496, %v503, %v505
      %v507 = vsel %vm495, %v485, %v488
      %v508 = vsel %vm498, %v494, 1326507024
      %v509 = vsel %vm497, %v491, %v508
      %v510 = vsel %vm496, %v507, %v509
      %v511 = vshll.u32 %v471, 8
      %v512 = vmul.u32.u64.compose %v511, %v510
      %v513 = vextract.low.u32 %v512
      %v514 = vextract.high.u32 %v512
      %v515 = vmul.u32.u64.compose %v511, %v506
      %v516 = vextract.low.u32 %v515
      %v517 = vextract.high.u32 %v515
      %v518 = vmul.u32 %v511, %v502
      %v519 = vadd.s32 %v514, %v516
      %vm520 = vc.u32 %v514, %v516
      %v521 = vadd.s32 %v517, 1
      %v522 = vsel %vm520, %v521, %v517
      %v523 = vadd.s32 %v518, %v522
      %v524 = vadd.s32 %v523, 536870912
      %v525 = vshrl.u32 %v524, 30
      %v526 = vshll.u32 %v525, 30
      %v527 = vsub.s32 %v523, %v526
      %vm528 = vcmp.lt.s32.totalorder %v527, 0
      %v529 = vsub.s32 0, %v527
      %v530 = vsel %vm528, %v529, %v527
      %v531 = vclz %v530
      %v532 = vsub.s32 %v531, 2
      %vm533 = vcmp.gt.s32.totalorder 0, %v532
      %v534 = vsel %vm533, 0, %v532
      %v535 = vsub.s32 32, %v534
      %v536 = vshll.u32 %v527, %v534
      %v537 = vshrl.u32 %v519, %v535
      %v538 = vor.u32 %v536, %v537
      %v539 = vsub.s32 4294967266, %v534
      %v540 = vadd.s32 %v539, 127
      %v541 = vshll.u32 %v540, 23
      %v542 = vor.u32 4788187, %v541
      %v543 = vand.u32 2147483647, %v542
      %v545 = vcvt.s32.f32 %v538
      %v546 = vmul.f32 %v545, %v543
      %v547 = vxor.u32 %v546, 2147483648
      %v548 = vsel %vm465, %v547, %v546
      %v549 = vsub.s32 4, %v525
      %v550 = vsel %vm465, %v549, %v525
      %v551 = vsel %vm464, %v344, %v548
      %v552 = vsel %vm464, 0, %v550
      %v553 = vcosq.f32.pop %v551
      %v554 = vsinq.f32.pop %v551
      %vm555 = vweird.f32 %v344
      %v556 = vadd.s32 %v552, 3
      %v557 = vand.u32 %v556, 3
      %vm558 = vcmp.lt.s32.totalorder %v557, 2
      %vm559 = vcmp.eq.s32.totalorder %v557, 0
      %v560 = vxor.u32 %v554, 2147483648
      %v561 = vsel %vm559, %v553, %v560
      %vm562 = vcmp.eq.s32.totalorder %v557, 2
      %v563 = vxor.u32 %v553, 2147483648
      %v564 = vsel %vm562, %v563, %v554
      %v565 = vsel %vm558, %v561, %v564
      %v566 = vsel %vm555, nan, %v565
      %v567 = vand.u32 2147483647, %v345
      %vm568 = vcmp.le.f32.partialorder %v567, 0.7853982
      %vm569 = vcmp.lt.s32.totalorder %v345, 0
      %v570 = vand.u32 %v345, 2139095040
      %v571 = vshrl.u32 %v570, 23
      %v572 = vsub.s32 %v571, 127
      %v573 = vand.u32 2147483647, %v345
      %v574 = vand.u32 %v573, 8388607
      %v575 = vor.u32 %v574, 8388608
      %v576 = vsub.s32 0, %v575
      %v577 = vadd.s32 %v572, 1
      %vm578 = vcmp.gt.s32.totalorder %v577, 0
      %v579 = vsel %vm578, %v577, 0
      %v580 = vshrl.u32 %v579, 5
      %v581 = vand.u32 %v579, 31
      %v582 = vsub.s32 32, %v581
      %v583 = vshrl.u32 683565275, %v582
      %v584 = vshll.u32 683565275, %v581
      %v585 = vshrl.u32 2475754826, %v582
      %v586 = vor.u32 %v584, %v585
      %v587 = vshll.u32 2475754826, %v581
      %v588 = vshrl.u32 2131351028, %v582
      %v589 = vor.u32 %v587, %v588
      %v590 = vshll.u32 2131351028, %v581
      %v591 = vshrl.u32 2102212464, %v582
      %v592 = vor.u32 %v590, %v591
      %v593 = vshll.u32 2102212464, %v581
      %v594 = vshrl.u32 920167782, %v582
      %v595 = vor.u32 %v593, %v594
      %v596 = vshll.u32 920167782, %v581
      %v597 = vshrl.u32 1326507024, %v582
      %v598 = vor.u32 %v596, %v597
      %vm599 = vcmp.lt.s32.totalorder %v580, 1
      %vm600 = vcmp.lt.s32.totalorder %v580, 2
      %vm601 = vcmp.lt.s32.totalorder %v580, 3
      %vm602 = vcmp.lt.s32.totalorder %v580, 4
      %v603 = vsel %vm599, %v583, %v586
      %v604 = vsel %vm602, %v592, 2102212464
      %v605 = vsel %vm601, %v589, %v604
      %v606 = vsel %vm600, %v603, %v605
      %v607 = vsel %vm599, %v586, %v589
      %v608 = vsel %vm602, %v595, 920167782
      %v609 = vsel %vm601, %v592, %v608
      %v610 = vsel %vm600, %v607, %v609
      %v611 = vsel %vm599, %v589, %v592
      %v612 = vsel %vm602, %v598, 1326507024
      %v613 = vsel %vm601, %v595, %v612
      %v614 = vsel %vm600, %v611, %v613
      %v615 = vshll.u32 %v575, 8
      %v616 = vmul.u32.u64.compose %v615, %v614
      %v617 = vextract.low.u32 %v616
      %v618 = vextract.high.u32 %v616
      %v619 = vmul.u32.u64.compose %v615, %v610
      %v620 = vextract.low.u32 %v619
      %v621 = vextract.high.u32 %v619
      %v622 = vmul.u32 %v615, %v606
      %v623 = vadd.s32 %v618, %v620
      %vm624 = vc.u32 %v618, %v620
      %v625 = vadd.s32 %v621, 1
      %v626 = vsel %vm624, %v625, %v621
      %v627 = vadd.s32 %v622, %v626
      %v628 = vadd.s32 %v627, 536870912
      %v629 = vshrl.u32 %v628, 30
      %v630 = vshll.u32 %v629, 30
      %v631 = vsub.s32 %v627, %v630
      %vm632 = vcmp.lt.s32.totalorder %v631, 0
      %v633 = vsub.s32 0, %v631
      %v634 = vsel %vm632, %v633, %v631
      %v635 = vclz %v634
      %v636 = vsub.s32 %v635, 2
      %vm637 = vcmp.gt.s32.totalorder 0, %v636
      %v638 = vsel %vm637, 0, %v636
      %v639 = vsub.s32 32, %v638
      %v640 = vshll.u32 %v631, %v638
      %v641 = vshrl.u32 %v623, %v639
      %v642 = vor.u32 %v640, %v641
      %v643 = vsub.s32 4294967266, %v638
      %v644 = vadd.s32 %v643, 127
      %v645 = vshll.u32 %v644, 23
      %v646 = vor.u32 4788187, %v645
      %v647 = vand.u32 2147483647, %v646
      %v649 = vcvt.s32.f32 %v642
      %v650 = vmul.f32 %v649, %v647
      %v651 = vxor.u32 %v650, 2147483648
      %v652 = vsel %vm569, %v651, %v650
      %v653 = vsub.s32 4, %v629
      %v654 = vsel %vm569, %v653, %v629
      %v655 = vsel %vm568, %v345, %v652
      %v656 = vsel %vm568, 0, %v654
      %v657 = vcosq.f32.pop %v655
      %v658 = vsinq.f32.pop %v655
      %vm659 = vweird.f32 %v345
      %v660 = vadd.s32 %v656, 3
      %v661 = vand.u32 %v660, 3
      %vm662 = vcmp.lt.s32.totalorder %v661, 2
      %vm663 = vcmp.eq.s32.totalorder %v661, 0
      %v664 = vxor.u32 %v658, 2147483648
      %v665 = vsel %vm663, %v657, %v664
      %vm666 = vcmp.eq.s32.totalorder %v661, 2
      %v667 = vxor.u32 %v657, 2147483648
      %v668 = vsel %vm666, %v667, %v658
      %v669 = vsel %vm662, %v665, %v668
      %v670 = vsel %vm659, nan, %v669
      %v671 = vand.u32 2147483647, %v346
      %vm672 = vcmp.le.f32.partialorder %v671, 0.7853982
      %vm673 = vcmp.lt.s32.totalorder %v346, 0
      %v674 = vand.u32 %v346, 2139095040
      %v675 = vshrl.u32 %v674, 23
      %v676 = vsub.s32 %v675, 127
      %v677 = vand.u32 2147483647, %v346
      %v678 = vand.u32 %v677, 8388607
      %v679 = vor.u32 %v678, 8388608
      %v680 = vsub.s32 0, %v679
      %v681 = vadd.s32 %v676, 1
      %vm682 = vcmp.gt.s32.totalorder %v681, 0
      %v683 = vsel %vm682, %v681, 0
      %v684 = vshrl.u32 %v683, 5
      %v685 = vand.u32 %v683, 31
      %v686 = vsub.s32 32, %v685
      %v687 = vshrl.u32 683565275, %v686
      %v688 = vshll.u32 683565275, %v685
      %v689 = vshrl.u32 2475754826, %v686
      %v690 = vor.u32 %v688, %v689
      %v691 = vshll.u32 2475754826, %v685
      %v692 = vshrl.u32 2131351028, %v686
      %v693 = vor.u32 %v691, %v692
      %v694 = vshll.u32 2131351028, %v685
      %v695 = vshrl.u32 2102212464, %v686
      %v696 = vor.u32 %v694, %v695
      %v697 = vshll.u32 2102212464, %v685
      %v698 = vshrl.u32 920167782, %v686
      %v699 = vor.u32 %v697, %v698
      %v700 = vshll.u32 920167782, %v685
      %v701 = vshrl.u32 1326507024, %v686
      %v702 = vor.u32 %v700, %v701
      %vm703 = vcmp.lt.s32.totalorder %v684, 1
      %vm704 = vcmp.lt.s32.totalorder %v684, 2
      %vm705 = vcmp.lt.s32.totalorder %v684, 3
      %vm706 = vcmp.lt.s32.totalorder %v684, 4
      %v707 = vsel %vm703, %v687, %v690
      %v708 = vsel %vm706, %v696, 2102212464
      %v709 = vsel %vm705, %v693, %v708
      %v710 = vsel %vm704, %v707, %v709
      %v711 = vsel %vm703, %v690, %v693
      %v712 = vsel %vm706, %v699, 920167782
      %v713 = vsel %vm705, %v696, %v712
      %v714 = vsel %vm704, %v711, %v713
      %v715 = vsel %vm703, %v693, %v696
      %v716 = vsel %vm706, %v702, 1326507024
      %v717 = vsel %vm705, %v699, %v716
      %v718 = vsel %vm704, %v715, %v717
      %v719 = vshll.u32 %v679, 8
      %v720 = vmul.u32.u64.compose %v719, %v718
      %v721 = vextract.low.u32 %v720
      %v722 = vextract.high.u32 %v720
      %v723 = vmul.u32.u64.compose %v719, %v714
      %v724 = vextract.low.u32 %v723
      %v725 = vextract.high.u32 %v723
      %v726 = vmul.u32 %v719, %v710
      %v727 = vadd.s32 %v722, %v724
      %vm728 = vc.u32 %v722, %v724
      %v729 = vadd.s32 %v725, 1
      %v730 = vsel %vm728, %v729, %v725
      %v731 = vadd.s32 %v726, %v730
      %v732 = vadd.s32 %v731, 536870912
      %v733 = vshrl.u32 %v732, 30
      %v734 = vshll.u32 %v733, 30
      %v735 = vsub.s32 %v731, %v734
      %vm736 = vcmp.lt.s32.totalorder %v735, 0
      %v737 = vsub.s32 0, %v735
      %v738 = vsel %vm736, %v737, %v735
      %v739 = vclz %v738
      %v740 = vsub.s32 %v739, 2
      %vm741 = vcmp.gt.s32.totalorder 0, %v740
      %v742 = vsel %vm741, 0, %v740
      %v743 = vsub.s32 32, %v742
      %v744 = vshll.u32 %v735, %v742
      %v745 = vshrl.u32 %v727, %v743
      %v746 = vor.u32 %v744, %v745
      %v747 = vsub.s32 4294967266, %v742
      %v748 = vadd.s32 %v747, 127
      %v749 = vshll.u32 %v748, 23
      %v750 = vor.u32 4788187, %v749
      %v751 = vand.u32 2147483647, %v750
      %v753 = vcvt.s32.f32 %v746
      %v754 = vmul.f32 %v753, %v751
      %v755 = vxor.u32 %v754, 2147483648
      %v756 = vsel %vm673, %v755, %v754
      %v757 = vsub.s32 4, %v733
      %v758 = vsel %vm673, %v757, %v733
      %v759 = vsel %vm672, %v346, %v756
      %v760 = vsel %vm672, 0, %v758
      %v761 = vcosq.f32.pop %v759
      %v762 = vsinq.f32.pop %v759
      %vm763 = vweird.f32 %v346
      %v764 = vadd.s32 %v760, 3
      %v765 = vand.u32 %v764, 3
      %vm766 = vcmp.lt.s32.totalorder %v765, 2
      %vm767 = vcmp.eq.s32.totalorder %v765, 0
      %v768 = vxor.u32 %v762, 2147483648
      %v769 = vsel %vm767, %v761, %v768
      %vm770 = vcmp.eq.s32.totalorder %v765, 2
      %v771 = vxor.u32 %v761, 2147483648
      %v772 = vsel %vm770, %v771, %v762
      %v773 = vsel %vm766, %v769, %v772
      %v774 = vsel %vm763, nan, %v773
      %v775 = vand.u32 2147483647, %v347
      %vm776 = vcmp.le.f32.partialorder %v775, 0.7853982
      %vm777 = vcmp.lt.s32.totalorder %v347, 0
      %v778 = vand.u32 %v347, 2139095040
      %v779 = vshrl.u32 %v778, 23
      %v780 = vsub.s32 %v779, 127
      %v781 = vand.u32 2147483647, %v347
      %v782 = vand.u32 %v781, 8388607
      %v783 = vor.u32 %v782, 8388608
      %v784 = vsub.s32 0, %v783
      %v785 = vadd.s32 %v780, 1
      %vm786 = vcmp.gt.s32.totalorder %v785, 0
      %v787 = vsel %vm786, %v785, 0
      %v788 = vshrl.u32 %v787, 5
      %v789 = vand.u32 %v787, 31
      %v790 = vsub.s32 32, %v789
      %v791 = vshrl.u32 683565275, %v790
      %v792 = vshll.u32 683565275, %v789
      %v793 = vshrl.u32 2475754826, %v790
      %v794 = vor.u32 %v792, %v793
      %v795 = vshll.u32 2475754826, %v789
      %v796 = vshrl.u32 2131351028, %v790
      %v797 = vor.u32 %v795, %v796
      %v798 = vshll.u32 2131351028, %v789
      %v799 = vshrl.u32 2102212464, %v790
      %v800 = vor.u32 %v798, %v799
      %v801 = vshll.u32 2102212464, %v789
      %v802 = vshrl.u32 920167782, %v790
      %v803 = vor.u32 %v801, %v802
      %v804 = vshll.u32 920167782, %v789
      %v805 = vshrl.u32 1326507024, %v790
      %v806 = vor.u32 %v804, %v805
      %vm807 = vcmp.lt.s32.totalorder %v788, 1
      %vm808 = vcmp.lt.s32.totalorder %v788, 2
      %vm809 = vcmp.lt.s32.totalorder %v788, 3
      %vm810 = vcmp.lt.s32.totalorder %v788, 4
      %v811 = vsel %vm807, %v791, %v794
      %v812 = vsel %vm810, %v800, 2102212464
      %v813 = vsel %vm809, %v797, %v812
      %v814 = vsel %vm808, %v811, %v813
      %v815 = vsel %vm807, %v794, %v797
      %v816 = vsel %vm810, %v803, 920167782
      %v817 = vsel %vm809, %v800, %v816
      %v818 = vsel %vm808, %v815, %v817
      %v819 = vsel %vm807, %v797, %v800
      %v820 = vsel %vm810, %v806, 1326507024
      %v821 = vsel %vm809, %v803, %v820
      %v822 = vsel %vm808, %v819, %v821
      %v823 = vshll.u32 %v783, 8
      %v824 = vmul.u32.u64.compose %v823, %v822
      %v825 = vextract.low.u32 %v824
      %v826 = vextract.high.u32 %v824
      %v827 = vmul.u32.u64.compose %v823, %v818
      %v828 = vextract.low.u32 %v827
      %v829 = vextract.high.u32 %v827
      %v830 = vmul.u32 %v823, %v814
      %v831 = vadd.s32 %v826, %v828
      %vm832 = vc.u32 %v826, %v828
      %v833 = vadd.s32 %v829, 1
      %v834 = vsel %vm832, %v833, %v829
      %v835 = vadd.s32 %v830, %v834
      %v836 = vadd.s32 %v835, 536870912
      %v837 = vshrl.u32 %v836, 30
      %v838 = vshll.u32 %v837, 30
      %v839 = vsub.s32 %v835, %v838
      %vm840 = vcmp.lt.s32.totalorder %v839, 0
      %v841 = vsub.s32 0, %v839
      %v842 = vsel %vm840, %v841, %v839
      %v843 = vclz %v842
      %v844 = vsub.s32 %v843, 2
      %vm845 = vcmp.gt.s32.totalorder 0, %v844
      %v846 = vsel %vm845, 0, %v844
      %v847 = vsub.s32 32, %v846
      %v848 = vshll.u32 %v839, %v846
      %v849 = vshrl.u32 %v831, %v847
      %v850 = vor.u32 %v848, %v849
      %v851 = vsub.s32 4294967266, %v846
      %v852 = vadd.s32 %v851, 127
      %v853 = vshll.u32 %v852, 23
      %v854 = vor.u32 4788187, %v853
      %v855 = vand.u32 2147483647, %v854
      %v857 = vcvt.s32.f32 %v850
      %v858 = vmul.f32 %v857, %v855
      %v859 = vxor.u32 %v858, 2147483648
      %v860 = vsel %vm777, %v859, %v858
      %v861 = vsub.s32 4, %v837
      %v862 = vsel %vm777, %v861, %v837
      %v863 = vsel %vm776, %v347, %v860
      %v864 = vsel %vm776, 0, %v862
      %v865 = vcosq.f32.pop %v863
      %v866 = vsinq.f32.pop %v863
      %vm867 = vweird.f32 %v347
      %v868 = vadd.s32 %v864, 3
      %v869 = vand.u32 %v868, 3
      %vm870 = vcmp.lt.s32.totalorder %v869, 2
      %vm871 = vcmp.eq.s32.totalorder %v869, 0
      %v872 = vxor.u32 %v866, 2147483648
      %v873 = vsel %vm871, %v865, %v872
      %vm874 = vcmp.eq.s32.totalorder %v869, 2
      %v875 = vxor.u32 %v865, 2147483648
      %v876 = vsel %vm874, %v875, %v866
      %v877 = vsel %vm870, %v873, %v876
      %v878 = vsel %vm867, nan, %v877
      %v879 = vand.u32 2147483647, %v348
      %vm880 = vcmp.le.f32.partialorder %v879, 0.7853982
      %vm881 = vcmp.lt.s32.totalorder %v348, 0
      %v882 = vand.u32 %v348, 2139095040
      %v883 = vshrl.u32 %v882, 23
      %v884 = vsub.s32 %v883, 127
      %v885 = vand.u32 2147483647, %v348
      %v886 = vand.u32 %v885, 8388607
      %v887 = vor.u32 %v886, 8388608
      %v888 = vsub.s32 0, %v887
      %v889 = vadd.s32 %v884, 1
      %vm890 = vcmp.gt.s32.totalorder %v889, 0
      %v891 = vsel %vm890, %v889, 0
      %v892 = vshrl.u32 %v891, 5
      %v893 = vand.u32 %v891, 31
      %v894 = vsub.s32 32, %v893
      %v895 = vshrl.u32 683565275, %v894
      %v896 = vshll.u32 683565275, %v893
      %v897 = vshrl.u32 2475754826, %v894
      %v898 = vor.u32 %v896, %v897
      %v899 = vshll.u32 2475754826, %v893
      %v900 = vshrl.u32 2131351028, %v894
      %v901 = vor.u32 %v899, %v900
      %v902 = vshll.u32 2131351028, %v893
      %v903 = vshrl.u32 2102212464, %v894
      %v904 = vor.u32 %v902, %v903
      %v905 = vshll.u32 2102212464, %v893
      %v906 = vshrl.u32 920167782, %v894
      %v907 = vor.u32 %v905, %v906
      %v908 = vshll.u32 920167782, %v893
      %v909 = vshrl.u32 1326507024, %v894
      %v910 = vor.u32 %v908, %v909
      %vm911 = vcmp.lt.s32.totalorder %v892, 1
      %vm912 = vcmp.lt.s32.totalorder %v892, 2
      %vm913 = vcmp.lt.s32.totalorder %v892, 3
      %vm914 = vcmp.lt.s32.totalorder %v892, 4
      %v915 = vsel %vm911, %v895, %v898
      %v916 = vsel %vm914, %v904, 2102212464
      %v917 = vsel %vm913, %v901, %v916
      %v918 = vsel %vm912, %v915, %v917
      %v919 = vsel %vm911, %v898, %v901
      %v920 = vsel %vm914, %v907, 920167782
      %v921 = vsel %vm913, %v904, %v920
      %v922 = vsel %vm912, %v919, %v921
      %v923 = vsel %vm911, %v901, %v904
      %v924 = vsel %vm914, %v910, 1326507024
      %v925 = vsel %vm913, %v907, %v924
      %v926 = vsel %vm912, %v923, %v925
      %v927 = vshll.u32 %v887, 8
      %v928 = vmul.u32.u64.compose %v927, %v926
      %v929 = vextract.low.u32 %v928
      %v930 = vextract.high.u32 %v928
      %v931 = vmul.u32.u64.compose %v927, %v922
      %v932 = vextract.low.u32 %v931
      %v933 = vextract.high.u32 %v931
      %v934 = vmul.u32 %v927, %v918
      %v935 = vadd.s32 %v930, %v932
      %vm936 = vc.u32 %v930, %v932
      %v937 = vadd.s32 %v933, 1
      %v938 = vsel %vm936, %v937, %v933
      %v939 = vadd.s32 %v934, %v938
      %v940 = vadd.s32 %v939, 536870912
      %v941 = vshrl.u32 %v940, 30
      %v942 = vshll.u32 %v941, 30
      %v943 = vsub.s32 %v939, %v942
      %vm944 = vcmp.lt.s32.totalorder %v943, 0
      %v945 = vsub.s32 0, %v943
      %v946 = vsel %vm944, %v945, %v943
      %v947 = vclz %v946
      %v948 = vsub.s32 %v947, 2
      %vm949 = vcmp.gt.s32.totalorder 0, %v948
      %v950 = vsel %vm949, 0, %v948
      %v951 = vsub.s32 32, %v950
      %v952 = vshll.u32 %v943, %v950
      %v953 = vshrl.u32 %v935, %v951
      %v954 = vor.u32 %v952, %v953
      %v955 = vsub.s32 4294967266, %v950
      %v956 = vadd.s32 %v955, 127
      %v957 = vshll.u32 %v956, 23
      %v958 = vor.u32 4788187, %v957
      %v959 = vand.u32 2147483647, %v958
      %v961 = vcvt.s32.f32 %v954
      %v962 = vmul.f32 %v961, %v959
      %v963 = vxor.u32 %v962, 2147483648
      %v964 = vsel %vm881, %v963, %v962
      %v965 = vsub.s32 4, %v941
      %v966 = vsel %vm881, %v965, %v941
      %v967 = vsel %vm880, %v348, %v964
      %v968 = vsel %vm880, 0, %v966
      %v969 = vcosq.f32.pop %v967
      %v970 = vsinq.f32.pop %v967
      %vm971 = vweird.f32 %v348
      %v972 = vadd.s32 %v968, 3
      %v973 = vand.u32 %v972, 3
      %vm974 = vcmp.lt.s32.totalorder %v973, 2
      %vm975 = vcmp.eq.s32.totalorder %v973, 0
      %v976 = vxor.u32 %v970, 2147483648
      %v977 = vsel %vm975, %v969, %v976
      %vm978 = vcmp.eq.s32.totalorder %v973, 2
      %v979 = vxor.u32 %v969, 2147483648
      %v980 = vsel %vm978, %v979, %v970
      %v981 = vsel %vm974, %v977, %v980
      %v982 = vsel %vm971, nan, %v981
      %v983 = vand.u32 2147483647, %v349
      %vm984 = vcmp.le.f32.partialorder %v983, 0.7853982
      %vm985 = vcmp.lt.s32.totalorder %v349, 0
      %v986 = vand.u32 %v349, 2139095040
      %v987 = vshrl.u32 %v986, 23
      %v988 = vsub.s32 %v987, 127
      %v989 = vand.u32 2147483647, %v349
      %v990 = vand.u32 %v989, 8388607
      %v991 = vor.u32 %v990, 8388608
      %v992 = vsub.s32 0, %v991
      %v993 = vadd.s32 %v988, 1
      %vm994 = vcmp.gt.s32.totalorder %v993, 0
      %v995 = vsel %vm994, %v993, 0
      %v996 = vshrl.u32 %v995, 5
      %v997 = vand.u32 %v995, 31
      %v998 = vsub.s32 32, %v997
      %v999 = vshrl.u32 683565275, %v998
      %v1000 = vshll.u32 683565275, %v997
      %v1001 = vshrl.u32 2475754826, %v998
      %v1002 = vor.u32 %v1000, %v1001
      %v1003 = vshll.u32 2475754826, %v997
      %v1004 = vshrl.u32 2131351028, %v998
      %v1005 = vor.u32 %v1003, %v1004
      %v1006 = vshll.u32 2131351028, %v997
      %v1007 = vshrl.u32 2102212464, %v998
      %v1008 = vor.u32 %v1006, %v1007
      %v1009 = vshll.u32 2102212464, %v997
      %v1010 = vshrl.u32 920167782, %v998
      %v1011 = vor.u32 %v1009, %v1010
      %v1012 = vshll.u32 920167782, %v997
      %v1013 = vshrl.u32 1326507024, %v998
      %v1014 = vor.u32 %v1012, %v1013
      %vm1015 = vcmp.lt.s32.totalorder %v996, 1
      %vm1016 = vcmp.lt.s32.totalorder %v996, 2
      %vm1017 = vcmp.lt.s32.totalorder %v996, 3
      %vm1018 = vcmp.lt.s32.totalorder %v996, 4
      %v1019 = vsel %vm1015, %v999, %v1002
      %v1020 = vsel %vm1018, %v1008, 2102212464
      %v1021 = vsel %vm1017, %v1005, %v1020
      %v1022 = vsel %vm1016, %v1019, %v1021
      %v1023 = vsel %vm1015, %v1002, %v1005
      %v1024 = vsel %vm1018, %v1011, 920167782
      %v1025 = vsel %vm1017, %v1008, %v1024
      %v1026 = vsel %vm1016, %v1023, %v1025
      %v1027 = vsel %vm1015, %v1005, %v1008
      %v1028 = vsel %vm1018, %v1014, 1326507024
      %v1029 = vsel %vm1017, %v1011, %v1028
      %v1030 = vsel %vm1016, %v1027, %v1029
      %v1031 = vshll.u32 %v991, 8
      %v1032 = vmul.u32.u64.compose %v1031, %v1030
      %v1033 = vextract.low.u32 %v1032
      %v1034 = vextract.high.u32 %v1032
      %v1035 = vmul.u32.u64.compose %v1031, %v1026
      %v1036 = vextract.low.u32 %v1035
      %v1037 = vextract.high.u32 %v1035
      %v1038 = vmul.u32 %v1031, %v1022
      %v1039 = vadd.s32 %v1034, %v1036
      %vm1040 = vc.u32 %v1034, %v1036
      %v1041 = vadd.s32 %v1037, 1
      %v1042 = vsel %vm1040, %v1041, %v1037
      %v1043 = vadd.s32 %v1038, %v1042
      %v1044 = vadd.s32 %v1043, 536870912
      %v1045 = vshrl.u32 %v1044, 30
      %v1046 = vshll.u32 %v1045, 30
      %v1047 = vsub.s32 %v1043, %v1046
      %vm1048 = vcmp.lt.s32.totalorder %v1047, 0
      %v1049 = vsub.s32 0, %v1047
      %v1050 = vsel %vm1048, %v1049, %v1047
      %v1051 = vclz %v1050
      %v1052 = vsub.s32 %v1051, 2
      %vm1053 = vcmp.gt.s32.totalorder 0, %v1052
      %v1054 = vsel %vm1053, 0, %v1052
      %v1055 = vsub.s32 32, %v1054
      %v1056 = vshll.u32 %v1047, %v1054
      %v1057 = vshrl.u32 %v1039, %v1055
      %v1058 = vor.u32 %v1056, %v1057
      %v1059 = vsub.s32 4294967266, %v1054
      %v1060 = vadd.s32 %v1059, 127
      %v1061 = vshll.u32 %v1060, 23
      %v1062 = vor.u32 4788187, %v1061
      %v1063 = vand.u32 2147483647, %v1062
      %v1065 = vcvt.s32.f32 %v1058
      %v1066 = vmul.f32 %v1065, %v1063
      %v1067 = vxor.u32 %v1066, 2147483648
      %v1068 = vsel %vm985, %v1067, %v1066
      %v1069 = vsub.s32 4, %v1045
      %v1070 = vsel %vm985, %v1069, %v1045
      %v1071 = vsel %vm984, %v349, %v1068
      %v1072 = vsel %vm984, 0, %v1070
      %v1073 = vcosq.f32.pop %v1071
      %v1074 = vsinq.f32.pop %v1071
      %vm1075 = vweird.f32 %v349
      %v1076 = vadd.s32 %v1072, 3
      %v1077 = vand.u32 %v1076, 3
      %vm1078 = vcmp.lt.s32.totalorder %v1077, 2
      %vm1079 = vcmp.eq.s32.totalorder %v1077, 0
      %v1080 = vxor.u32 %v1074, 2147483648
      %v1081 = vsel %vm1079, %v1073, %v1080
      %vm1082 = vcmp.eq.s32.totalorder %v1077, 2
      %v1083 = vxor.u32 %v1073, 2147483648
      %v1084 = vsel %vm1082, %v1083, %v1074
      %v1085 = vsel %vm1078, %v1081, %v1084
      %v1086 = vsel %vm1075, nan, %v1085
      %v1087 = vand.u32 2147483647, %v350
      %vm1088 = vcmp.le.f32.partialorder %v1087, 0.7853982
      %vm1089 = vcmp.lt.s32.totalorder %v350, 0
      %v1090 = vand.u32 %v350, 2139095040
      %v1091 = vshrl.u32 %v1090, 23
      %v1092 = vsub.s32 %v1091, 127
      %v1093 = vand.u32 2147483647, %v350
      %v1094 = vand.u32 %v1093, 8388607
      %v1095 = vor.u32 %v1094, 8388608
      %v1096 = vsub.s32 0, %v1095
      %v1097 = vadd.s32 %v1092, 1
      %vm1098 = vcmp.gt.s32.totalorder %v1097, 0
      %v1099 = vsel %vm1098, %v1097, 0
      %v1100 = vshrl.u32 %v1099, 5
      %v1101 = vand.u32 %v1099, 31
      %v1102 = vsub.s32 32, %v1101
      %v1103 = vshrl.u32 683565275, %v1102
      %v1104 = vshll.u32 683565275, %v1101
      %v1105 = vshrl.u32 2475754826, %v1102
      %v1106 = vor.u32 %v1104, %v1105
      %v1107 = vshll.u32 2475754826, %v1101
      %v1108 = vshrl.u32 2131351028, %v1102
      %v1109 = vor.u32 %v1107, %v1108
      %v1110 = vshll.u32 2131351028, %v1101
      %v1111 = vshrl.u32 2102212464, %v1102
      %v1112 = vor.u32 %v1110, %v1111
      %v1113 = vshll.u32 2102212464, %v1101
      %v1114 = vshrl.u32 920167782, %v1102
      %v1115 = vor.u32 %v1113, %v1114
      %v1116 = vshll.u32 920167782, %v1101
      %v1117 = vshrl.u32 1326507024, %v1102
      %v1118 = vor.u32 %v1116, %v1117
      %vm1119 = vcmp.lt.s32.totalorder %v1100, 1
      %vm1120 = vcmp.lt.s32.totalorder %v1100, 2
      %vm1121 = vcmp.lt.s32.totalorder %v1100, 3
      %vm1122 = vcmp.lt.s32.totalorder %v1100, 4
      %v1123 = vsel %vm1119, %v1103, %v1106
      %v1124 = vsel %vm1122, %v1112, 2102212464
      %v1125 = vsel %vm1121, %v1109, %v1124
      %v1126 = vsel %vm1120, %v1123, %v1125
      %v1127 = vsel %vm1119, %v1106, %v1109
      %v1128 = vsel %vm1122, %v1115, 920167782
      %v1129 = vsel %vm1121, %v1112, %v1128
      %v1130 = vsel %vm1120, %v1127, %v1129
      %v1131 = vsel %vm1119, %v1109, %v1112
      %v1132 = vsel %vm1122, %v1118, 1326507024
      %v1133 = vsel %vm1121, %v1115, %v1132
      %v1134 = vsel %vm1120, %v1131, %v1133
      %v1135 = vshll.u32 %v1095, 8
      %v1136 = vmul.u32.u64.compose %v1135, %v1134
      %v1137 = vextract.low.u32 %v1136
      %v1138 = vextract.high.u32 %v1136
      %v1139 = vmul.u32.u64.compose %v1135, %v1130
      %v1140 = vextract.low.u32 %v1139
      %v1141 = vextract.high.u32 %v1139
      %v1142 = vmul.u32 %v1135, %v1126
      %v1143 = vadd.s32 %v1138, %v1140
      %vm1144 = vc.u32 %v1138, %v1140
      %v1145 = vadd.s32 %v1141, 1
      %v1146 = vsel %vm1144, %v1145, %v1141
      %v1147 = vadd.s32 %v1142, %v1146
      %v1148 = vadd.s32 %v1147, 536870912
      %v1149 = vshrl.u32 %v1148, 30
      %v1150 = vshll.u32 %v1149, 30
      %v1151 = vsub.s32 %v1147, %v1150
      %vm1152 = vcmp.lt.s32.totalorder %v1151, 0
      %v1153 = vsub.s32 0, %v1151
      %v1154 = vsel %vm1152, %v1153, %v1151
      %v1155 = vclz %v1154
      %v1156 = vsub.s32 %v1155, 2
      %vm1157 = vcmp.gt.s32.totalorder 0, %v1156
      %v1158 = vsel %vm1157, 0, %v1156
      %v1159 = vsub.s32 32, %v1158
      %v1160 = vshll.u32 %v1151, %v1158
      %v1161 = vshrl.u32 %v1143, %v1159
      %v1162 = vor.u32 %v1160, %v1161
      %v1163 = vsub.s32 4294967266, %v1158
      %v1164 = vadd.s32 %v1163, 127
      %v1165 = vshll.u32 %v1164, 23
      %v1166 = vor.u32 4788187, %v1165
      %v1167 = vand.u32 2147483647, %v1166
      %v1169 = vcvt.s32.f32 %v1162
      %v1170 = vmul.f32 %v1169, %v1167
      %v1171 = vxor.u32 %v1170, 2147483648
      %v1172 = vsel %vm1089, %v1171, %v1170
      %v1173 = vsub.s32 4, %v1149
      %v1174 = vsel %vm1089, %v1173, %v1149
      %v1175 = vsel %vm1088, %v350, %v1172
      %v1176 = vsel %vm1088, 0, %v1174
      %v1177 = vcosq.f32.pop %v1175
      %v1178 = vsinq.f32.pop %v1175
      %vm1179 = vweird.f32 %v350
      %v1180 = vadd.s32 %v1176, 3
      %v1181 = vand.u32 %v1180, 3
      %vm1182 = vcmp.lt.s32.totalorder %v1181, 2
      %vm1183 = vcmp.eq.s32.totalorder %v1181, 0
      %v1184 = vxor.u32 %v1178, 2147483648
      %v1185 = vsel %vm1183, %v1177, %v1184
      %vm1186 = vcmp.eq.s32.totalorder %v1181, 2
      %v1187 = vxor.u32 %v1177, 2147483648
      %v1188 = vsel %vm1186, %v1187, %v1178
      %v1189 = vsel %vm1182, %v1185, %v1188
      %v1190 = vsel %vm1179, nan, %v1189
      %v1191 = vand.u32 2147483647, %v351
      %vm1192 = vcmp.le.f32.partialorder %v1191, 0.7853982
      %vm1193 = vcmp.lt.s32.totalorder %v351, 0
      %v1194 = vand.u32 %v351, 2139095040
      %v1195 = vshrl.u32 %v1194, 23
      %v1196 = vsub.s32 %v1195, 127
      %v1197 = vand.u32 2147483647, %v351
      %v1198 = vand.u32 %v1197, 8388607
      %v1199 = vor.u32 %v1198, 8388608
      %v1200 = vsub.s32 0, %v1199
      %v1201 = vadd.s32 %v1196, 1
      %vm1202 = vcmp.gt.s32.totalorder %v1201, 0
      %v1203 = vsel %vm1202, %v1201, 0
      %v1204 = vshrl.u32 %v1203, 5
      %v1205 = vand.u32 %v1203, 31
      %v1206 = vsub.s32 32, %v1205
      %v1207 = vshrl.u32 683565275, %v1206
      %v1208 = vshll.u32 683565275, %v1205
      %v1209 = vshrl.u32 2475754826, %v1206
      %v1210 = vor.u32 %v1208, %v1209
      %v1211 = vshll.u32 2475754826, %v1205
      %v1212 = vshrl.u32 2131351028, %v1206
      %v1213 = vor.u32 %v1211, %v1212
      %v1214 = vshll.u32 2131351028, %v1205
      %v1215 = vshrl.u32 2102212464, %v1206
      %v1216 = vor.u32 %v1214, %v1215
      %v1217 = vshll.u32 2102212464, %v1205
      %v1218 = vshrl.u32 920167782, %v1206
      %v1219 = vor.u32 %v1217, %v1218
      %v1220 = vshll.u32 920167782, %v1205
      %v1221 = vshrl.u32 1326507024, %v1206
      %v1222 = vor.u32 %v1220, %v1221
      %vm1223 = vcmp.lt.s32.totalorder %v1204, 1
      %vm1224 = vcmp.lt.s32.totalorder %v1204, 2
      %vm1225 = vcmp.lt.s32.totalorder %v1204, 3
      %vm1226 = vcmp.lt.s32.totalorder %v1204, 4
      %v1227 = vsel %vm1223, %v1207, %v1210
      %v1228 = vsel %vm1226, %v1216, 2102212464
      %v1229 = vsel %vm1225, %v1213, %v1228
      %v1230 = vsel %vm1224, %v1227, %v1229
      %v1231 = vsel %vm1223, %v1210, %v1213
      %v1232 = vsel %vm1226, %v1219, 920167782
      %v1233 = vsel %vm1225, %v1216, %v1232
      %v1234 = vsel %vm1224, %v1231, %v1233
      %v1235 = vsel %vm1223, %v1213, %v1216
      %v1236 = vsel %vm1226, %v1222, 1326507024
      %v1237 = vsel %vm1225, %v1219, %v1236
      %v1238 = vsel %vm1224, %v1235, %v1237
      %v1239 = vshll.u32 %v1199, 8
      %v1240 = vmul.u32.u64.compose %v1239, %v1238
      %v1241 = vextract.low.u32 %v1240
      %v1242 = vextract.high.u32 %v1240
      %v1243 = vmul.u32.u64.compose %v1239, %v1234
      %v1244 = vextract.low.u32 %v1243
      %v1245 = vextract.high.u32 %v1243
      %v1246 = vmul.u32 %v1239, %v1230
      %v1247 = vadd.s32 %v1242, %v1244
      %vm1248 = vc.u32 %v1242, %v1244
      %v1249 = vadd.s32 %v1245, 1
      %v1250 = vsel %vm1248, %v1249, %v1245
      %v1251 = vadd.s32 %v1246, %v1250
      %v1252 = vadd.s32 %v1251, 536870912
      %v1253 = vshrl.u32 %v1252, 30
      %v1254 = vshll.u32 %v1253, 30
      %v1255 = vsub.s32 %v1251, %v1254
      %vm1256 = vcmp.lt.s32.totalorder %v1255, 0
      %v1257 = vsub.s32 0, %v1255
      %v1258 = vsel %vm1256, %v1257, %v1255
      %v1259 = vclz %v1258
      %v1260 = vsub.s32 %v1259, 2
      %vm1261 = vcmp.gt.s32.totalorder 0, %v1260
      %v1262 = vsel %vm1261, 0, %v1260
      %v1263 = vsub.s32 32, %v1262
      %v1264 = vshll.u32 %v1255, %v1262
      %v1265 = vshrl.u32 %v1247, %v1263
      %v1266 = vor.u32 %v1264, %v1265
      %v1267 = vsub.s32 4294967266, %v1262
      %v1268 = vadd.s32 %v1267, 127
      %v1269 = vshll.u32 %v1268, 23
      %v1270 = vor.u32 4788187, %v1269
      %v1271 = vand.u32 2147483647, %v1270
      %v1273 = vcvt.s32.f32 %v1266
      %v1274 = vmul.f32 %v1273, %v1271
      %v1275 = vxor.u32 %v1274, 2147483648
      %v1276 = vsel %vm1193, %v1275, %v1274
      %v1277 = vsub.s32 4, %v1253
      %v1278 = vsel %vm1193, %v1277, %v1253
      %v1279 = vsel %vm1192, %v351, %v1276
      %v1280 = vsel %vm1192, 0, %v1278
      %v1281 = vcosq.f32.pop %v1279
      %v1282 = vsinq.f32.pop %v1279
      %vm1283 = vweird.f32 %v351
      %v1284 = vadd.s32 %v1280, 3
      %v1285 = vand.u32 %v1284, 3
      %vm1286 = vcmp.lt.s32.totalorder %v1285, 2
      %vm1287 = vcmp.eq.s32.totalorder %v1285, 0
      %v1288 = vxor.u32 %v1282, 2147483648
      %v1289 = vsel %vm1287, %v1281, %v1288
      %vm1290 = vcmp.eq.s32.totalorder %v1285, 2
      %v1291 = vxor.u32 %v1281, 2147483648
      %v1292 = vsel %vm1290, %v1291, %v1282
      %v1293 = vsel %vm1286, %v1289, %v1292
      %v1294 = vsel %vm1283, nan, %v1293
      %v1295 = vand.u32 2147483647, %v352
      %vm1296 = vcmp.le.f32.partialorder %v1295, 0.7853982
      %vm1297 = vcmp.lt.s32.totalorder %v352, 0
      %v1298 = vand.u32 %v352, 2139095040
      %v1299 = vshrl.u32 %v1298, 23
      %v1300 = vsub.s32 %v1299, 127
      %v1301 = vand.u32 2147483647, %v352
      %v1302 = vand.u32 %v1301, 8388607
      %v1303 = vor.u32 %v1302, 8388608
      %v1304 = vsub.s32 0, %v1303
      %v1305 = vadd.s32 %v1300, 1
      %vm1306 = vcmp.gt.s32.totalorder %v1305, 0
      %v1307 = vsel %vm1306, %v1305, 0
      %v1308 = vshrl.u32 %v1307, 5
      %v1309 = vand.u32 %v1307, 31
      %v1310 = vsub.s32 32, %v1309
      %v1311 = vshrl.u32 683565275, %v1310
      %v1312 = vshll.u32 683565275, %v1309
      %v1313 = vshrl.u32 2475754826, %v1310
      %v1314 = vor.u32 %v1312, %v1313
      %v1315 = vshll.u32 2475754826, %v1309
      %v1316 = vshrl.u32 2131351028, %v1310
      %v1317 = vor.u32 %v1315, %v1316
      %v1318 = vshll.u32 2131351028, %v1309
      %v1319 = vshrl.u32 2102212464, %v1310
      %v1320 = vor.u32 %v1318, %v1319
      %v1321 = vshll.u32 2102212464, %v1309
      %v1322 = vshrl.u32 920167782, %v1310
      %v1323 = vor.u32 %v1321, %v1322
      %v1324 = vshll.u32 920167782, %v1309
      %v1325 = vshrl.u32 1326507024, %v1310
      %v1326 = vor.u32 %v1324, %v1325
      %vm1327 = vcmp.lt.s32.totalorder %v1308, 1
      %vm1328 = vcmp.lt.s32.totalorder %v1308, 2
      %vm1329 = vcmp.lt.s32.totalorder %v1308, 3
      %vm1330 = vcmp.lt.s32.totalorder %v1308, 4
      %v1331 = vsel %vm1327, %v1311, %v1314
      %v1332 = vsel %vm1330, %v1320, 2102212464
      %v1333 = vsel %vm1329, %v1317, %v1332
      %v1334 = vsel %vm1328, %v1331, %v1333
      %v1335 = vsel %vm1327, %v1314, %v1317
      %v1336 = vsel %vm1330, %v1323, 920167782
      %v1337 = vsel %vm1329, %v1320, %v1336
      %v1338 = vsel %vm1328, %v1335, %v1337
      %v1339 = vsel %vm1327, %v1317, %v1320
      %v1340 = vsel %vm1330, %v1326, 1326507024
      %v1341 = vsel %vm1329, %v1323, %v1340
      %v1342 = vsel %vm1328, %v1339, %v1341
      %v1343 = vshll.u32 %v1303, 8
      %v1344 = vmul.u32.u64.compose %v1343, %v1342
      %v1345 = vextract.low.u32 %v1344
      %v1346 = vextract.high.u32 %v1344
      %v1347 = vmul.u32.u64.compose %v1343, %v1338
      %v1348 = vextract.low.u32 %v1347
      %v1349 = vextract.high.u32 %v1347
      %v1350 = vmul.u32 %v1343, %v1334
      %v1351 = vadd.s32 %v1346, %v1348
      %vm1352 = vc.u32 %v1346, %v1348
      %v1353 = vadd.s32 %v1349, 1
      %v1354 = vsel %vm1352, %v1353, %v1349
      %v1355 = vadd.s32 %v1350, %v1354
      %v1356 = vadd.s32 %v1355, 536870912
      %v1357 = vshrl.u32 %v1356, 30
      %v1358 = vshll.u32 %v1357, 30
      %v1359 = vsub.s32 %v1355, %v1358
      %vm1360 = vcmp.lt.s32.totalorder %v1359, 0
      %v1361 = vsub.s32 0, %v1359
      %v1362 = vsel %vm1360, %v1361, %v1359
      %v1363 = vclz %v1362
      %v1364 = vsub.s32 %v1363, 2
      %vm1365 = vcmp.gt.s32.totalorder 0, %v1364
      %v1366 = vsel %vm1365, 0, %v1364
      %v1367 = vsub.s32 32, %v1366
      %v1368 = vshll.u32 %v1359, %v1366
      %v1369 = vshrl.u32 %v1351, %v1367
      %v1370 = vor.u32 %v1368, %v1369
      %v1371 = vsub.s32 4294967266, %v1366
      %v1372 = vadd.s32 %v1371, 127
      %v1373 = vshll.u32 %v1372, 23
      %v1374 = vor.u32 4788187, %v1373
      %v1375 = vand.u32 2147483647, %v1374
      %v1377 = vcvt.s32.f32 %v1370
      %v1378 = vmul.f32 %v1377, %v1375
      %v1379 = vxor.u32 %v1378, 2147483648
      %v1380 = vsel %vm1297, %v1379, %v1378
      %v1381 = vsub.s32 4, %v1357
      %v1382 = vsel %vm1297, %v1381, %v1357
      %v1383 = vsel %vm1296, %v352, %v1380
      %v1384 = vsel %vm1296, 0, %v1382
      %v1385 = vcosq.f32.pop %v1383
      %v1386 = vsinq.f32.pop %v1383
      %vm1387 = vweird.f32 %v352
      %v1388 = vadd.s32 %v1384, 3
      %v1389 = vand.u32 %v1388, 3
      %vm1390 = vcmp.lt.s32.totalorder %v1389, 2
      %vm1391 = vcmp.eq.s32.totalorder %v1389, 0
      %v1392 = vxor.u32 %v1386, 2147483648
      %v1393 = vsel %vm1391, %v1385, %v1392
      %vm1394 = vcmp.eq.s32.totalorder %v1389, 2
      %v1395 = vxor.u32 %v1385, 2147483648
      %v1396 = vsel %vm1394, %v1395, %v1386
      %v1397 = vsel %vm1390, %v1393, %v1396
      %v1398 = vsel %vm1387, nan, %v1397
      %v1399 = vand.u32 2147483647, %v353
      %vm1400 = vcmp.le.f32.partialorder %v1399, 0.7853982
      %vm1401 = vcmp.lt.s32.totalorder %v353, 0
      %v1402 = vand.u32 %v353, 2139095040
      %v1403 = vshrl.u32 %v1402, 23
      %v1404 = vsub.s32 %v1403, 127
      %v1405 = vand.u32 2147483647, %v353
      %v1406 = vand.u32 %v1405, 8388607
      %v1407 = vor.u32 %v1406, 8388608
      %v1408 = vsub.s32 0, %v1407
      %v1409 = vadd.s32 %v1404, 1
      %vm1410 = vcmp.gt.s32.totalorder %v1409, 0
      %v1411 = vsel %vm1410, %v1409, 0
      %v1412 = vshrl.u32 %v1411, 5
      %v1413 = vand.u32 %v1411, 31
      %v1414 = vsub.s32 32, %v1413
      %v1415 = vshrl.u32 683565275, %v1414
      %v1416 = vshll.u32 683565275, %v1413
      %v1417 = vshrl.u32 2475754826, %v1414
      %v1418 = vor.u32 %v1416, %v1417
      %v1419 = vshll.u32 2475754826, %v1413
      %v1420 = vshrl.u32 2131351028, %v1414
      %v1421 = vor.u32 %v1419, %v1420
      %v1422 = vshll.u32 2131351028, %v1413
      %v1423 = vshrl.u32 2102212464, %v1414
      %v1424 = vor.u32 %v1422, %v1423
      %v1425 = vshll.u32 2102212464, %v1413
      %v1426 = vshrl.u32 920167782, %v1414
      %v1427 = vor.u32 %v1425, %v1426
      %v1428 = vshll.u32 920167782, %v1413
      %v1429 = vshrl.u32 1326507024, %v1414
      %v1430 = vor.u32 %v1428, %v1429
      %vm1431 = vcmp.lt.s32.totalorder %v1412, 1
      %vm1432 = vcmp.lt.s32.totalorder %v1412, 2
      %vm1433 = vcmp.lt.s32.totalorder %v1412, 3
      %vm1434 = vcmp.lt.s32.totalorder %v1412, 4
      %v1435 = vsel %vm1431, %v1415, %v1418
      %v1436 = vsel %vm1434, %v1424, 2102212464
      %v1437 = vsel %vm1433, %v1421, %v1436
      %v1438 = vsel %vm1432, %v1435, %v1437
      %v1439 = vsel %vm1431, %v1418, %v1421
      %v1440 = vsel %vm1434, %v1427, 920167782
      %v1441 = vsel %vm1433, %v1424, %v1440
      %v1442 = vsel %vm1432, %v1439, %v1441
      %v1443 = vsel %vm1431, %v1421, %v1424
      %v1444 = vsel %vm1434, %v1430, 1326507024
      %v1445 = vsel %vm1433, %v1427, %v1444
      %v1446 = vsel %vm1432, %v1443, %v1445
      %v1447 = vshll.u32 %v1407, 8
      %v1448 = vmul.u32.u64.compose %v1447, %v1446
      %v1449 = vextract.low.u32 %v1448
      %v1450 = vextract.high.u32 %v1448
      %v1451 = vmul.u32.u64.compose %v1447, %v1442
      %v1452 = vextract.low.u32 %v1451
      %v1453 = vextract.high.u32 %v1451
      %v1454 = vmul.u32 %v1447, %v1438
      %v1455 = vadd.s32 %v1450, %v1452
      %vm1456 = vc.u32 %v1450, %v1452
      %v1457 = vadd.s32 %v1453, 1
      %v1458 = vsel %vm1456, %v1457, %v1453
      %v1459 = vadd.s32 %v1454, %v1458
      %v1460 = vadd.s32 %v1459, 536870912
      %v1461 = vshrl.u32 %v1460, 30
      %v1462 = vshll.u32 %v1461, 30
      %v1463 = vsub.s32 %v1459, %v1462
      %vm1464 = vcmp.lt.s32.totalorder %v1463, 0
      %v1465 = vsub.s32 0, %v1463
      %v1466 = vsel %vm1464, %v1465, %v1463
      %v1467 = vclz %v1466
      %v1468 = vsub.s32 %v1467, 2
      %vm1469 = vcmp.gt.s32.totalorder 0, %v1468
      %v1470 = vsel %vm1469, 0, %v1468
      %v1471 = vsub.s32 32, %v1470
      %v1472 = vshll.u32 %v1463, %v1470
      %v1473 = vshrl.u32 %v1455, %v1471
      %v1474 = vor.u32 %v1472, %v1473
      %v1475 = vsub.s32 4294967266, %v1470
      %v1476 = vadd.s32 %v1475, 127
      %v1477 = vshll.u32 %v1476, 23
      %v1478 = vor.u32 4788187, %v1477
      %v1479 = vand.u32 2147483647, %v1478
      %v1481 = vcvt.s32.f32 %v1474
      %v1482 = vmul.f32 %v1481, %v1479
      %v1483 = vxor.u32 %v1482, 2147483648
      %v1484 = vsel %vm1401, %v1483, %v1482
      %v1485 = vsub.s32 4, %v1461
      %v1486 = vsel %vm1401, %v1485, %v1461
      %v1487 = vsel %vm1400, %v353, %v1484
      %v1488 = vsel %vm1400, 0, %v1486
      %v1489 = vcosq.f32.pop %v1487
      %v1490 = vsinq.f32.pop %v1487
      %vm1491 = vweird.f32 %v353
      %v1492 = vadd.s32 %v1488, 3
      %v1493 = vand.u32 %v1492, 3
      %vm1494 = vcmp.lt.s32.totalorder %v1493, 2
      %vm1495 = vcmp.eq.s32.totalorder %v1493, 0
      %v1496 = vxor.u32 %v1490, 2147483648
      %v1497 = vsel %vm1495, %v1489, %v1496
      %vm1498 = vcmp.eq.s32.totalorder %v1493, 2
      %v1499 = vxor.u32 %v1489, 2147483648
      %v1500 = vsel %vm1498, %v1499, %v1490
      %v1501 = vsel %vm1494, %v1497, %v1500
      %v1502 = vsel %vm1491, nan, %v1501
      %v1503 = vand.u32 2147483647, %v354
      %vm1504 = vcmp.le.f32.partialorder %v1503, 0.7853982
      %vm1505 = vcmp.lt.s32.totalorder %v354, 0
      %v1506 = vand.u32 %v354, 2139095040
      %v1507 = vshrl.u32 %v1506, 23
      %v1508 = vsub.s32 %v1507, 127
      %v1509 = vand.u32 2147483647, %v354
      %v1510 = vand.u32 %v1509, 8388607
      %v1511 = vor.u32 %v1510, 8388608
      %v1512 = vsub.s32 0, %v1511
      %v1513 = vadd.s32 %v1508, 1
      %vm1514 = vcmp.gt.s32.totalorder %v1513, 0
      %v1515 = vsel %vm1514, %v1513, 0
      %v1516 = vshrl.u32 %v1515, 5
      %v1517 = vand.u32 %v1515, 31
      %v1518 = vsub.s32 32, %v1517
      %v1519 = vshrl.u32 683565275, %v1518
      %v1520 = vshll.u32 683565275, %v1517
      %v1521 = vshrl.u32 2475754826, %v1518
      %v1522 = vor.u32 %v1520, %v1521
      %v1523 = vshll.u32 2475754826, %v1517
      %v1524 = vshrl.u32 2131351028, %v1518
      %v1525 = vor.u32 %v1523, %v1524
      %v1526 = vshll.u32 2131351028, %v1517
      %v1527 = vshrl.u32 2102212464, %v1518
      %v1528 = vor.u32 %v1526, %v1527
      %v1529 = vshll.u32 2102212464, %v1517
      %v1530 = vshrl.u32 920167782, %v1518
      %v1531 = vor.u32 %v1529, %v1530
      %v1532 = vshll.u32 920167782, %v1517
      %v1533 = vshrl.u32 1326507024, %v1518
      %v1534 = vor.u32 %v1532, %v1533
      %vm1535 = vcmp.lt.s32.totalorder %v1516, 1
      %vm1536 = vcmp.lt.s32.totalorder %v1516, 2
      %vm1537 = vcmp.lt.s32.totalorder %v1516, 3
      %vm1538 = vcmp.lt.s32.totalorder %v1516, 4
      %v1539 = vsel %vm1535, %v1519, %v1522
      %v1540 = vsel %vm1538, %v1528, 2102212464
      %v1541 = vsel %vm1537, %v1525, %v1540
      %v1542 = vsel %vm1536, %v1539, %v1541
      %v1543 = vsel %vm1535, %v1522, %v1525
      %v1544 = vsel %vm1538, %v1531, 920167782
      %v1545 = vsel %vm1537, %v1528, %v1544
      %v1546 = vsel %vm1536, %v1543, %v1545
      %v1547 = vsel %vm1535, %v1525, %v1528
      %v1548 = vsel %vm1538, %v1534, 1326507024
      %v1549 = vsel %vm1537, %v1531, %v1548
      %v1550 = vsel %vm1536, %v1547, %v1549
      %v1551 = vshll.u32 %v1511, 8
      %v1552 = vmul.u32.u64.compose %v1551, %v1550
      %v1553 = vextract.low.u32 %v1552
      %v1554 = vextract.high.u32 %v1552
      %v1555 = vmul.u32.u64.compose %v1551, %v1546
      %v1556 = vextract.low.u32 %v1555
      %v1557 = vextract.high.u32 %v1555
      %v1558 = vmul.u32 %v1551, %v1542
      %v1559 = vadd.s32 %v1554, %v1556
      %vm1560 = vc.u32 %v1554, %v1556
      %v1561 = vadd.s32 %v1557, 1
      %v1562 = vsel %vm1560, %v1561, %v1557
      %v1563 = vadd.s32 %v1558, %v1562
      %v1564 = vadd.s32 %v1563, 536870912
      %v1565 = vshrl.u32 %v1564, 30
      %v1566 = vshll.u32 %v1565, 30
      %v1567 = vsub.s32 %v1563, %v1566
      %vm1568 = vcmp.lt.s32.totalorder %v1567, 0
      %v1569 = vsub.s32 0, %v1567
      %v1570 = vsel %vm1568, %v1569, %v1567
      %v1571 = vclz %v1570
      %v1572 = vsub.s32 %v1571, 2
      %vm1573 = vcmp.gt.s32.totalorder 0, %v1572
      %v1574 = vsel %vm1573, 0, %v1572
      %v1575 = vsub.s32 32, %v1574
      %v1576 = vshll.u32 %v1567, %v1574
      %v1577 = vshrl.u32 %v1559, %v1575
      %v1578 = vor.u32 %v1576, %v1577
      %v1579 = vsub.s32 4294967266, %v1574
      %v1580 = vadd.s32 %v1579, 127
      %v1581 = vshll.u32 %v1580, 23
      %v1582 = vor.u32 4788187, %v1581
      %v1583 = vand.u32 2147483647, %v1582
      %v1585 = vcvt.s32.f32 %v1578
      %v1586 = vmul.f32 %v1585, %v1583
      %v1587 = vxor.u32 %v1586, 2147483648
      %v1588 = vsel %vm1505, %v1587, %v1586
      %v1589 = vsub.s32 4, %v1565
      %v1590 = vsel %vm1505, %v1589, %v1565
      %v1591 = vsel %vm1504, %v354, %v1588
      %v1592 = vsel %vm1504, 0, %v1590
      %v1593 = vcosq.f32.pop %v1591
      %v1594 = vsinq.f32.pop %v1591
      %vm1595 = vweird.f32 %v354
      %v1596 = vadd.s32 %v1592, 3
      %v1597 = vand.u32 %v1596, 3
      %vm1598 = vcmp.lt.s32.totalorder %v1597, 2
      %vm1599 = vcmp.eq.s32.totalorder %v1597, 0
      %v1600 = vxor.u32 %v1594, 2147483648
      %v1601 = vsel %vm1599, %v1593, %v1600
      %vm1602 = vcmp.eq.s32.totalorder %v1597, 2
      %v1603 = vxor.u32 %v1593, 2147483648
      %v1604 = vsel %vm1602, %v1603, %v1594
      %v1605 = vsel %vm1598, %v1601, %v1604
      %v1606 = vsel %vm1595, nan, %v1605
      %v1607 = vand.u32 2147483647, %v355
      %vm1608 = vcmp.le.f32.partialorder %v1607, 0.7853982
      %vm1609 = vcmp.lt.s32.totalorder %v355, 0
      %v1610 = vand.u32 %v355, 2139095040
      %v1611 = vshrl.u32 %v1610, 23
      %v1612 = vsub.s32 %v1611, 127
      %v1613 = vand.u32 2147483647, %v355
      %v1614 = vand.u32 %v1613, 8388607
      %v1615 = vor.u32 %v1614, 8388608
      %v1616 = vsub.s32 0, %v1615
      %v1617 = vadd.s32 %v1612, 1
      %vm1618 = vcmp.gt.s32.totalorder %v1617, 0
      %v1619 = vsel %vm1618, %v1617, 0
      %v1620 = vshrl.u32 %v1619, 5
      %v1621 = vand.u32 %v1619, 31
      %v1622 = vsub.s32 32, %v1621
      %v1623 = vshrl.u32 683565275, %v1622
      %v1624 = vshll.u32 683565275, %v1621
      %v1625 = vshrl.u32 2475754826, %v1622
      %v1626 = vor.u32 %v1624, %v1625
      %v1627 = vshll.u32 2475754826, %v1621
      %v1628 = vshrl.u32 2131351028, %v1622
      %v1629 = vor.u32 %v1627, %v1628
      %v1630 = vshll.u32 2131351028, %v1621
      %v1631 = vshrl.u32 2102212464, %v1622
      %v1632 = vor.u32 %v1630, %v1631
      %v1633 = vshll.u32 2102212464, %v1621
      %v1634 = vshrl.u32 920167782, %v1622
      %v1635 = vor.u32 %v1633, %v1634
      %v1636 = vshll.u32 920167782, %v1621
      %v1637 = vshrl.u32 1326507024, %v1622
      %v1638 = vor.u32 %v1636, %v1637
      %vm1639 = vcmp.lt.s32.totalorder %v1620, 1
      %vm1640 = vcmp.lt.s32.totalorder %v1620, 2
      %vm1641 = vcmp.lt.s32.totalorder %v1620, 3
      %vm1642 = vcmp.lt.s32.totalorder %v1620, 4
      %v1643 = vsel %vm1639, %v1623, %v1626
      %v1644 = vsel %vm1642, %v1632, 2102212464
      %v1645 = vsel %vm1641, %v1629, %v1644
      %v1646 = vsel %vm1640, %v1643, %v1645
      %v1647 = vsel %vm1639, %v1626, %v1629
      %v1648 = vsel %vm1642, %v1635, 920167782
      %v1649 = vsel %vm1641, %v1632, %v1648
      %v1650 = vsel %vm1640, %v1647, %v1649
      %v1651 = vsel %vm1639, %v1629, %v1632
      %v1652 = vsel %vm1642, %v1638, 1326507024
      %v1653 = vsel %vm1641, %v1635, %v1652
      %v1654 = vsel %vm1640, %v1651, %v1653
      %v1655 = vshll.u32 %v1615, 8
      %v1656 = vmul.u32.u64.compose %v1655, %v1654
      %v1657 = vextract.low.u32 %v1656
      %v1658 = vextract.high.u32 %v1656
      %v1659 = vmul.u32.u64.compose %v1655, %v1650
      %v1660 = vextract.low.u32 %v1659
      %v1661 = vextract.high.u32 %v1659
      %v1662 = vmul.u32 %v1655, %v1646
      %v1663 = vadd.s32 %v1658, %v1660
      %vm1664 = vc.u32 %v1658, %v1660
      %v1665 = vadd.s32 %v1661, 1
      %v1666 = vsel %vm1664, %v1665, %v1661
      %v1667 = vadd.s32 %v1662, %v1666
      %v1668 = vadd.s32 %v1667, 536870912
      %v1669 = vshrl.u32 %v1668, 30
      %v1670 = vshll.u32 %v1669, 30
      %v1671 = vsub.s32 %v1667, %v1670
      %vm1672 = vcmp.lt.s32.totalorder %v1671, 0
      %v1673 = vsub.s32 0, %v1671
      %v1674 = vsel %vm1672, %v1673, %v1671
      %v1675 = vclz %v1674
      %v1676 = vsub.s32 %v1675, 2
      %vm1677 = vcmp.gt.s32.totalorder 0, %v1676
      %v1678 = vsel %vm1677, 0, %v1676
      %v1679 = vsub.s32 32, %v1678
      %v1680 = vshll.u32 %v1671, %v1678
      %v1681 = vshrl.u32 %v1663, %v1679
      %v1682 = vor.u32 %v1680, %v1681
      %v1683 = vsub.s32 4294967266, %v1678
      %v1684 = vadd.s32 %v1683, 127
      %v1685 = vshll.u32 %v1684, 23
      %v1686 = vor.u32 4788187, %v1685
      %v1687 = vand.u32 2147483647, %v1686
      %v1689 = vcvt.s32.f32 %v1682
      %v1690 = vmul.f32 %v1689, %v1687
      %v1691 = vxor.u32 %v1690, 2147483648
      %v1692 = vsel %vm1609, %v1691, %v1690
      %v1693 = vsub.s32 4, %v1669
      %v1694 = vsel %vm1609, %v1693, %v1669
      %v1695 = vsel %vm1608, %v355, %v1692
      %v1696 = vsel %vm1608, 0, %v1694
      %v1697 = vcosq.f32.pop %v1695
      %v1698 = vsinq.f32.pop %v1695
      %vm1699 = vweird.f32 %v355
      %v1700 = vadd.s32 %v1696, 3
      %v1701 = vand.u32 %v1700, 3
      %vm1702 = vcmp.lt.s32.totalorder %v1701, 2
      %vm1703 = vcmp.eq.s32.totalorder %v1701, 0
      %v1704 = vxor.u32 %v1698, 2147483648
      %v1705 = vsel %vm1703, %v1697, %v1704
      %vm1706 = vcmp.eq.s32.totalorder %v1701, 2
      %v1707 = vxor.u32 %v1697, 2147483648
      %v1708 = vsel %vm1706, %v1707, %v1698
      %v1709 = vsel %vm1702, %v1705, %v1708
      %v1710 = vsel %vm1699, nan, %v1709
      %v1711 = vand.u32 2147483647, %v356
      %vm1712 = vcmp.le.f32.partialorder %v1711, 0.7853982
      %vm1713 = vcmp.lt.s32.totalorder %v356, 0
      %v1714 = vand.u32 %v356, 2139095040
      %v1715 = vshrl.u32 %v1714, 23
      %v1716 = vsub.s32 %v1715, 127
      %v1717 = vand.u32 2147483647, %v356
      %v1718 = vand.u32 %v1717, 8388607
      %v1719 = vor.u32 %v1718, 8388608
      %v1720 = vsub.s32 0, %v1719
      %v1721 = vadd.s32 %v1716, 1
      %vm1722 = vcmp.gt.s32.totalorder %v1721, 0
      %v1723 = vsel %vm1722, %v1721, 0
      %v1724 = vshrl.u32 %v1723, 5
      %v1725 = vand.u32 %v1723, 31
      %v1726 = vsub.s32 32, %v1725
      %v1727 = vshrl.u32 683565275, %v1726
      %v1728 = vshll.u32 683565275, %v1725
      %v1729 = vshrl.u32 2475754826, %v1726
      %v1730 = vor.u32 %v1728, %v1729
      %v1731 = vshll.u32 2475754826, %v1725
      %v1732 = vshrl.u32 2131351028, %v1726
      %v1733 = vor.u32 %v1731, %v1732
      %v1734 = vshll.u32 2131351028, %v1725
      %v1735 = vshrl.u32 2102212464, %v1726
      %v1736 = vor.u32 %v1734, %v1735
      %v1737 = vshll.u32 2102212464, %v1725
      %v1738 = vshrl.u32 920167782, %v1726
      %v1739 = vor.u32 %v1737, %v1738
      %v1740 = vshll.u32 920167782, %v1725
      %v1741 = vshrl.u32 1326507024, %v1726
      %v1742 = vor.u32 %v1740, %v1741
      %vm1743 = vcmp.lt.s32.totalorder %v1724, 1
      %vm1744 = vcmp.lt.s32.totalorder %v1724, 2
      %vm1745 = vcmp.lt.s32.totalorder %v1724, 3
      %vm1746 = vcmp.lt.s32.totalorder %v1724, 4
      %v1747 = vsel %vm1743, %v1727, %v1730
      %v1748 = vsel %vm1746, %v1736, 2102212464
      %v1749 = vsel %vm1745, %v1733, %v1748
      %v1750 = vsel %vm1744, %v1747, %v1749
      %v1751 = vsel %vm1743, %v1730, %v1733
      %v1752 = vsel %vm1746, %v1739, 920167782
      %v1753 = vsel %vm1745, %v1736, %v1752
      %v1754 = vsel %vm1744, %v1751, %v1753
      %v1755 = vsel %vm1743, %v1733, %v1736
      %v1756 = vsel %vm1746, %v1742, 1326507024
      %v1757 = vsel %vm1745, %v1739, %v1756
      %v1758 = vsel %vm1744, %v1755, %v1757
      %v1759 = vshll.u32 %v1719, 8
      %v1760 = vmul.u32.u64.compose %v1759, %v1758
      %v1761 = vextract.low.u32 %v1760
      %v1762 = vextract.high.u32 %v1760
      %v1763 = vmul.u32.u64.compose %v1759, %v1754
      %v1764 = vextract.low.u32 %v1763
      %v1765 = vextract.high.u32 %v1763
      %v1766 = vmul.u32 %v1759, %v1750
      %v1767 = vadd.s32 %v1762, %v1764
      %vm1768 = vc.u32 %v1762, %v1764
      %v1769 = vadd.s32 %v1765, 1
      %v1770 = vsel %vm1768, %v1769, %v1765
      %v1771 = vadd.s32 %v1766, %v1770
      %v1772 = vadd.s32 %v1771, 536870912
      %v1773 = vshrl.u32 %v1772, 30
      %v1774 = vshll.u32 %v1773, 30
      %v1775 = vsub.s32 %v1771, %v1774
      %vm1776 = vcmp.lt.s32.totalorder %v1775, 0
      %v1777 = vsub.s32 0, %v1775
      %v1778 = vsel %vm1776, %v1777, %v1775
      %v1779 = vclz %v1778
      %v1780 = vsub.s32 %v1779, 2
      %vm1781 = vcmp.gt.s32.totalorder 0, %v1780
      %v1782 = vsel %vm1781, 0, %v1780
      %v1783 = vsub.s32 32, %v1782
      %v1784 = vshll.u32 %v1775, %v1782
      %v1785 = vshrl.u32 %v1767, %v1783
      %v1786 = vor.u32 %v1784, %v1785
      %v1787 = vsub.s32 4294967266, %v1782
      %v1788 = vadd.s32 %v1787, 127
      %v1789 = vshll.u32 %v1788, 23
      %v1790 = vor.u32 4788187, %v1789
      %v1791 = vand.u32 2147483647, %v1790
      %v1793 = vcvt.s32.f32 %v1786
      %v1794 = vmul.f32 %v1793, %v1791
      %v1795 = vxor.u32 %v1794, 2147483648
      %v1796 = vsel %vm1713, %v1795, %v1794
      %v1797 = vsub.s32 4, %v1773
      %v1798 = vsel %vm1713, %v1797, %v1773
      %v1799 = vsel %vm1712, %v356, %v1796
      %v1800 = vsel %vm1712, 0, %v1798
      %v1801 = vcosq.f32.pop %v1799
      %v1802 = vsinq.f32.pop %v1799
      %vm1803 = vweird.f32 %v356
      %v1804 = vadd.s32 %v1800, 3
      %v1805 = vand.u32 %v1804, 3
      %vm1806 = vcmp.lt.s32.totalorder %v1805, 2
      %vm1807 = vcmp.eq.s32.totalorder %v1805, 0
      %v1808 = vxor.u32 %v1802, 2147483648
      %v1809 = vsel %vm1807, %v1801, %v1808
      %vm1810 = vcmp.eq.s32.totalorder %v1805, 2
      %v1811 = vxor.u32 %v1801, 2147483648
      %v1812 = vsel %vm1810, %v1811, %v1802
      %v1813 = vsel %vm1806, %v1809, %v1812
      %v1814 = vsel %vm1803, nan, %v1813
      %v1815 = vand.u32 2147483647, %v357
      %vm1816 = vcmp.le.f32.partialorder %v1815, 0.7853982
      %vm1817 = vcmp.lt.s32.totalorder %v357, 0
      %v1818 = vand.u32 %v357, 2139095040
      %v1819 = vshrl.u32 %v1818, 23
      %v1820 = vsub.s32 %v1819, 127
      %v1821 = vand.u32 2147483647, %v357
      %v1822 = vand.u32 %v1821, 8388607
      %v1823 = vor.u32 %v1822, 8388608
      %v1824 = vsub.s32 0, %v1823
      %v1825 = vadd.s32 %v1820, 1
      %vm1826 = vcmp.gt.s32.totalorder %v1825, 0
      %v1827 = vsel %vm1826, %v1825, 0
      %v1828 = vshrl.u32 %v1827, 5
      %v1829 = vand.u32 %v1827, 31
      %v1830 = vsub.s32 32, %v1829
      %v1831 = vshrl.u32 683565275, %v1830
      %v1832 = vshll.u32 683565275, %v1829
      %v1833 = vshrl.u32 2475754826, %v1830
      %v1834 = vor.u32 %v1832, %v1833
      %v1835 = vshll.u32 2475754826, %v1829
      %v1836 = vshrl.u32 2131351028, %v1830
      %v1837 = vor.u32 %v1835, %v1836
      %v1838 = vshll.u32 2131351028, %v1829
      %v1839 = vshrl.u32 2102212464, %v1830
      %v1840 = vor.u32 %v1838, %v1839
      %v1841 = vshll.u32 2102212464, %v1829
      %v1842 = vshrl.u32 920167782, %v1830
      %v1843 = vor.u32 %v1841, %v1842
      %v1844 = vshll.u32 920167782, %v1829
      %v1845 = vshrl.u32 1326507024, %v1830
      %v1846 = vor.u32 %v1844, %v1845
      %vm1847 = vcmp.lt.s32.totalorder %v1828, 1
      %vm1848 = vcmp.lt.s32.totalorder %v1828, 2
      %vm1849 = vcmp.lt.s32.totalorder %v1828, 3
      %vm1850 = vcmp.lt.s32.totalorder %v1828, 4
      %v1851 = vsel %vm1847, %v1831, %v1834
      %v1852 = vsel %vm1850, %v1840, 2102212464
      %v1853 = vsel %vm1849, %v1837, %v1852
      %v1854 = vsel %vm1848, %v1851, %v1853
      %v1855 = vsel %vm1847, %v1834, %v1837
      %v1856 = vsel %vm1850, %v1843, 920167782
      %v1857 = vsel %vm1849, %v1840, %v1856
      %v1858 = vsel %vm1848, %v1855, %v1857
      %v1859 = vsel %vm1847, %v1837, %v1840
      %v1860 = vsel %vm1850, %v1846, 1326507024
      %v1861 = vsel %vm1849, %v1843, %v1860
      %v1862 = vsel %vm1848, %v1859, %v1861
      %v1863 = vshll.u32 %v1823, 8
      %v1864 = vmul.u32.u64.compose %v1863, %v1862
      %v1865 = vextract.low.u32 %v1864
      %v1866 = vextract.high.u32 %v1864
      %v1867 = vmul.u32.u64.compose %v1863, %v1858
      %v1868 = vextract.low.u32 %v1867
      %v1869 = vextract.high.u32 %v1867
      %v1870 = vmul.u32 %v1863, %v1854
      %v1871 = vadd.s32 %v1866, %v1868
      %vm1872 = vc.u32 %v1866, %v1868
      %v1873 = vadd.s32 %v1869, 1
      %v1874 = vsel %vm1872, %v1873, %v1869
      %v1875 = vadd.s32 %v1870, %v1874
      %v1876 = vadd.s32 %v1875, 536870912
      %v1877 = vshrl.u32 %v1876, 30
      %v1878 = vshll.u32 %v1877, 30
      %v1879 = vsub.s32 %v1875, %v1878
      %vm1880 = vcmp.lt.s32.totalorder %v1879, 0
      %v1881 = vsub.s32 0, %v1879
      %v1882 = vsel %vm1880, %v1881, %v1879
      %v1883 = vclz %v1882
      %v1884 = vsub.s32 %v1883, 2
      %vm1885 = vcmp.gt.s32.totalorder 0, %v1884
      %v1886 = vsel %vm1885, 0, %v1884
      %v1887 = vsub.s32 32, %v1886
      %v1888 = vshll.u32 %v1879, %v1886
      %v1889 = vshrl.u32 %v1871, %v1887
      %v1890 = vor.u32 %v1888, %v1889
      %v1891 = vsub.s32 4294967266, %v1886
      %v1892 = vadd.s32 %v1891, 127
      %v1893 = vshll.u32 %v1892, 23
      %v1894 = vor.u32 4788187, %v1893
      %v1895 = vand.u32 2147483647, %v1894
      %v1897 = vcvt.s32.f32 %v1890
      %v1898 = vmul.f32 %v1897, %v1895
      %v1899 = vxor.u32 %v1898, 2147483648
      %v1900 = vsel %vm1817, %v1899, %v1898
      %v1901 = vsub.s32 4, %v1877
      %v1902 = vsel %vm1817, %v1901, %v1877
      %v1903 = vsel %vm1816, %v357, %v1900
      %v1904 = vsel %vm1816, 0, %v1902
      %v1905 = vcosq.f32.pop %v1903
      %v1906 = vsinq.f32.pop %v1903
      %vm1907 = vweird.f32 %v357
      %v1908 = vadd.s32 %v1904, 3
      %v1909 = vand.u32 %v1908, 3
      %vm1910 = vcmp.lt.s32.totalorder %v1909, 2
      %vm1911 = vcmp.eq.s32.totalorder %v1909, 0
      %v1912 = vxor.u32 %v1906, 2147483648
      %v1913 = vsel %vm1911, %v1905, %v1912
      %vm1914 = vcmp.eq.s32.totalorder %v1909, 2
      %v1915 = vxor.u32 %v1905, 2147483648
      %v1916 = vsel %vm1914, %v1915, %v1906
      %v1917 = vsel %vm1910, %v1913, %v1916
      %v1918 = vsel %vm1907, nan, %v1917
      %v1919 = vand.u32 2147483647, %v358
      %vm1920 = vcmp.le.f32.partialorder %v1919, 0.7853982
      %vm1921 = vcmp.lt.s32.totalorder %v358, 0
      %v1922 = vand.u32 %v358, 2139095040
      %v1923 = vshrl.u32 %v1922, 23
      %v1924 = vsub.s32 %v1923, 127
      %v1925 = vand.u32 2147483647, %v358
      %v1926 = vand.u32 %v1925, 8388607
      %v1927 = vor.u32 %v1926, 8388608
      %v1928 = vsub.s32 0, %v1927
      %v1929 = vadd.s32 %v1924, 1
      %vm1930 = vcmp.gt.s32.totalorder %v1929, 0
      %v1931 = vsel %vm1930, %v1929, 0
      %v1932 = vshrl.u32 %v1931, 5
      %v1933 = vand.u32 %v1931, 31
      %v1934 = vsub.s32 32, %v1933
      %v1935 = vshrl.u32 683565275, %v1934
      %v1936 = vshll.u32 683565275, %v1933
      %v1937 = vshrl.u32 2475754826, %v1934
      %v1938 = vor.u32 %v1936, %v1937
      %v1939 = vshll.u32 2475754826, %v1933
      %v1940 = vshrl.u32 2131351028, %v1934
      %v1941 = vor.u32 %v1939, %v1940
      %v1942 = vshll.u32 2131351028, %v1933
      %v1943 = vshrl.u32 2102212464, %v1934
      %v1944 = vor.u32 %v1942, %v1943
      %v1945 = vshll.u32 2102212464, %v1933
      %v1946 = vshrl.u32 920167782, %v1934
      %v1947 = vor.u32 %v1945, %v1946
      %v1948 = vshll.u32 920167782, %v1933
      %v1949 = vshrl.u32 1326507024, %v1934
      %v1950 = vor.u32 %v1948, %v1949
      %vm1951 = vcmp.lt.s32.totalorder %v1932, 1
      %vm1952 = vcmp.lt.s32.totalorder %v1932, 2
      %vm1953 = vcmp.lt.s32.totalorder %v1932, 3
      %vm1954 = vcmp.lt.s32.totalorder %v1932, 4
      %v1955 = vsel %vm1951, %v1935, %v1938
      %v1956 = vsel %vm1954, %v1944, 2102212464
      %v1957 = vsel %vm1953, %v1941, %v1956
      %v1958 = vsel %vm1952, %v1955, %v1957
      %v1959 = vsel %vm1951, %v1938, %v1941
      %v1960 = vsel %vm1954, %v1947, 920167782
      %v1961 = vsel %vm1953, %v1944, %v1960
      %v1962 = vsel %vm1952, %v1959, %v1961
      %v1963 = vsel %vm1951, %v1941, %v1944
      %v1964 = vsel %vm1954, %v1950, 1326507024
      %v1965 = vsel %vm1953, %v1947, %v1964
      %v1966 = vsel %vm1952, %v1963, %v1965
      %v1967 = vshll.u32 %v1927, 8
      %v1968 = vmul.u32.u64.compose %v1967, %v1966
      %v1969 = vextract.low.u32 %v1968
      %v1970 = vextract.high.u32 %v1968
      %v1971 = vmul.u32.u64.compose %v1967, %v1962
      %v1972 = vextract.low.u32 %v1971
      %v1973 = vextract.high.u32 %v1971
      %v1974 = vmul.u32 %v1967, %v1958
      %v1975 = vadd.s32 %v1970, %v1972
      %vm1976 = vc.u32 %v1970, %v1972
      %v1977 = vadd.s32 %v1973, 1
      %v1978 = vsel %vm1976, %v1977, %v1973
      %v1979 = vadd.s32 %v1974, %v1978
      %v1980 = vadd.s32 %v1979, 536870912
      %v1981 = vshrl.u32 %v1980, 30
      %v1982 = vshll.u32 %v1981, 30
      %v1983 = vsub.s32 %v1979, %v1982
      %vm1984 = vcmp.lt.s32.totalorder %v1983, 0
      %v1985 = vsub.s32 0, %v1983
      %v1986 = vsel %vm1984, %v1985, %v1983
      %v1987 = vclz %v1986
      %v1988 = vsub.s32 %v1987, 2
      %vm1989 = vcmp.gt.s32.totalorder 0, %v1988
      %v1990 = vsel %vm1989, 0, %v1988
      %v1991 = vsub.s32 32, %v1990
      %v1992 = vshll.u32 %v1983, %v1990
      %v1993 = vshrl.u32 %v1975, %v1991
      %v1994 = vor.u32 %v1992, %v1993
      %v1995 = vsub.s32 4294967266, %v1990
      %v1996 = vadd.s32 %v1995, 127
      %v1997 = vshll.u32 %v1996, 23
      %v1998 = vor.u32 4788187, %v1997
      %v1999 = vand.u32 2147483647, %v1998
      %v2001 = vcvt.s32.f32 %v1994
      %v2002 = vmul.f32 %v2001, %v1999
      %v2003 = vxor.u32 %v2002, 2147483648
      %v2004 = vsel %vm1921, %v2003, %v2002
      %v2005 = vsub.s32 4, %v1981
      %v2006 = vsel %vm1921, %v2005, %v1981
      %v2007 = vsel %vm1920, %v358, %v2004
      %v2008 = vsel %vm1920, 0, %v2006
      %v2009 = vcosq.f32.pop %v2007
      %v2010 = vsinq.f32.pop %v2007
      %vm2011 = vweird.f32 %v358
      %v2012 = vadd.s32 %v2008, 3
      %v2013 = vand.u32 %v2012, 3
      %vm2014 = vcmp.lt.s32.totalorder %v2013, 2
      %vm2015 = vcmp.eq.s32.totalorder %v2013, 0
      %v2016 = vxor.u32 %v2010, 2147483648
      %v2017 = vsel %vm2015, %v2009, %v2016
      %vm2018 = vcmp.eq.s32.totalorder %v2013, 2
      %v2019 = vxor.u32 %v2009, 2147483648
      %v2020 = vsel %vm2018, %v2019, %v2010
      %v2021 = vsel %vm2014, %v2017, %v2020
      %v2022 = vsel %vm2011, nan, %v2021
      %v2023 = vlaneseq
      %v2024 = vshrl.u32 %v2023, 7
      %v2025 = vsub.s32 3, %v2024
      %v2026 = vrot.slane %v218, %v2025
      %v2027 = vmul.f32 %v462, %v2026
      %v2028 = vmul.f32 %v566, %v2026
      %v2029 = vmul.f32 %v670, %v2026
      %v2030 = vmul.f32 %v774, %v2026
      %v2031 = vmul.f32 %v878, %v2026
      %v2032 = vmul.f32 %v982, %v2026
      %v2033 = vmul.f32 %v1086, %v2026
      %v2034 = vmul.f32 %v1190, %v2026
      %v2035 = vmul.f32 %v1294, %v2026
      %v2036 = vmul.f32 %v1398, %v2026
      %v2037 = vmul.f32 %v1502, %v2026
      %v2038 = vmul.f32 %v1606, %v2026
      %v2039 = vmul.f32 %v1710, %v2026
      %v2040 = vmul.f32 %v1814, %v2026
      %v2041 = vmul.f32 %v1918, %v2026
      %v2042 = vmul.f32 %v2022, %v2026
      %v2043 = vadd.f32 %v303, %v2027
      %v2044 = vadd.f32 %v304, %v2028
      %v2045 = vadd.f32 %v305, %v2029
      %v2046 = vadd.f32 %v306, %v2030
      %v2047 = vadd.f32 %v307, %v2031
      %v2048 = vadd.f32 %v308, %v2032
      %v2049 = vadd.f32 %v309, %v2033
      %v2050 = vadd.f32 %v310, %v2034
      %v2051 = vadd.f32 %v311, %v2035
      %v2052 = vadd.f32 %v312, %v2036
      %v2053 = vadd.f32 %v313, %v2037
      %v2054 = vadd.f32 %v314, %v2038
      %v2055 = vadd.f32 %v315, %v2039
      %v2056 = vadd.f32 %v316, %v2040
      %v2057 = vadd.f32 %v317, %v2041
      %v2058 = vadd.f32 %v318, %v2042
      %v2059 = vpack.c.bf16 %v2044, %v2043
      %v2060 = vpack.c.bf16 %v2046, %v2045
      %v2061 = vpack.c.bf16 %v2048, %v2047
      %v2062 = vpack.c.bf16 %v2050, %v2049
      %v2063 = vpack.c.bf16 %v2052, %v2051
      %v2064 = vpack.c.bf16 %v2054, %v2053
      %v2065 = vpack.c.bf16 %v2056, %v2055
      %v2066 = vpack.c.bf16 %v2058, %v2057
      %v2067 = vld [vmem:[%s2] sm:$0xff]
      %v2068 = vld [vmem:[%s2 + $0x8] sm:$0xff]
      %v2069 = vld [vmem:[%s2 + $0x10] sm:$0xff]
      %v2070 = vld [vmem:[%s2 + $0x18] sm:$0xff]
      %v2075 = vunpack.c.l.b16 %v2067
      %v2076 = vunpack.c.h.b16 %v2067
      %v2077 = vunpack.c.l.b16 %v2068
      %v2078 = vunpack.c.h.b16 %v2068
      %v2079 = vunpack.c.l.b16 %v2069
      %v2080 = vunpack.c.h.b16 %v2069
      %v2081 = vunpack.c.l.b16 %v2070
      %v2082 = vunpack.c.h.b16 %v2070
      %v2083 = vpack.c.b16 %v2077, %v2075
      %v2084 = vpack.c.b16 %v2078, %v2076
      %v2085 = vpack.c.b16 %v2081, %v2079
      %v2086 = vpack.c.b16 %v2082, %v2080
      %vm2091 = vcmask 261120
      %v2093 = vsel %vm2091, %v2059, 0
      %v2096 = vsel %vm2091, %v2060, 0
      %v2099 = vsel %vm2091, %v2061, 0
      %v2102 = vsel %vm2091, %v2062, 0
      %v2105 = vsel %vm2091, %v2063, 0
      %v2108 = vsel %vm2091, %v2064, 0
      %v2111 = vsel %vm2091, %v2065, 0
      %v2114 = vsel %vm2091, %v2066, 0
      %2116 = vmatprep.subr.bf16.mxu0 %v2084
      %2117 = vmatpush1.bf16.msra.mxu0 %v2083
      %2118 = vmatprep.subr.bf16.mxu0 %v2086
      %2119 = vmatpush1.bf16.msra.mxu0 %v2085
      %2120 = vmatprep.subr.bf16.mxu0 0
      %2121 = vmatpush1.bf16.msra.mxu0 0
      %2122 = vmatprep.subr.bf16.mxu0 0
      %2123 = vmatpush1.bf16.msra.mxu0 0
      %2124 = vmatprep.subr.bf16.mxu0 0
      %2125 = vmatpush1.bf16.msra.mxu0 0
      %2126 = vmatprep.subr.bf16.mxu0 0
      %2127 = vmatpush1.bf16.msra.mxu0 0
      %2128 = vmatprep.subr.bf16.mxu0 0
      %2129 = vmatpush1.bf16.msra.mxu0 0
      %2130 = vmatprep.subr.bf16.mxu0 0
      %2131 = vmatpush1.bf16.msra.mxu0 0
      %2132 = vmatprep.subr.bf16.mxu0 0
      %2133 = vmatpush1.bf16.msra.mxu0 0
      %2134 = vmatprep.subr.bf16.mxu0 0
      %2135 = vmatpush1.bf16.msra.mxu0 0
      %2136 = vmatprep.subr.bf16.mxu0 0
      %2137 = vmatpush1.bf16.msra.mxu0 0
      %2138 = vmatprep.subr.bf16.mxu0 0
      %2139 = vmatpush1.bf16.msra.mxu0 0
      %2140 = vmatprep.subr.bf16.mxu0 0
      %2141 = vmatpush1.bf16.msra.mxu0 0
      %2142 = vmatprep.subr.bf16.mxu0 0
      %2143 = vmatpush1.bf16.msra.mxu0 0
      %2144 = vmatprep.subr.bf16.mxu0 0
      %2145 = vmatpush1.bf16.msra.mxu0 0
      %2146 = vmatprep.subr.bf16.mxu0 0
      %2147 = vmatpush1.bf16.msra.mxu0 0
      %2148 = vmatprep.mubr.bf16.mxu0 0
      %2149 = vmatmul.mubr.bf16.gmra.mrb[0].mxu0 %v2093
      %v2150 = vpop.f32.mrb[0].mxu0
      %v2151 = vadd.f32 0.0, %v2150
      %v2152 = vpop.f32.mrb[0].mxu0
      %v2153 = vadd.f32 0.0, %v2152
      %v2154 = vpop.f32.mrb[0].mxu0
      %v2155 = vadd.f32 0.0, %v2154
      %v2156 = vpop.f32.mrb[0].mxu0
      %v2157 = vadd.f32 0.0, %v2156
      %2158 = vmatprep.mubr.bf16.mxu0 0
      %2159 = vmatmul.mubr.bf16.gmra.mrb[0].mxu0 %v2096
      %v2160 = vpop.f32.mrb[0].mxu0
      %v2161 = vadd.f32 0.0, %v2160
      %v2162 = vpop.f32.mrb[0].mxu0
      %v2163 = vadd.f32 0.0, %v2162
      %v2164 = vpop.f32.mrb[0].mxu0
      %v2165 = vadd.f32 0.0, %v2164
      %v2166 = vpop.f32.mrb[0].mxu0
      %v2167 = vadd.f32 0.0, %v2166
      %2168 = vmatprep.mubr.bf16.mxu0 0
      %2169 = vmatmul.mubr.bf16.gmra.mrb[0].mxu0 %v2099
      %v2170 = vpop.f32.mrb[0].mxu0
      %v2171 = vadd.f32 0.0, %v2170
      %v2172 = vpop.f32.mrb[0].mxu0
      %v2173 = vadd.f32 0.0, %v2172
      %v2174 = vpop.f32.mrb[0].mxu0
      %v2175 = vadd.f32 0.0, %v2174
      %v2176 = vpop.f32.mrb[0].mxu0
      %v2177 = vadd.f32 0.0, %v2176
      %2178 = vmatprep.mubr.bf16.mxu0 0
      %2179 = vmatmul.mubr.bf16.gmra.mrb[0].mxu0 %v2102
      %v2180 = vpop.f32.mrb[0].mxu0
      %v2181 = vadd.f32 0.0, %v2180
      %v2182 = vpop.f32.mrb[0].mxu0
      %v2183 = vadd.f32 0.0, %v2182
      %v2184 = vpop.f32.mrb[0].mxu0
      %v2185 = vadd.f32 0.0, %v2184
      %v2186 = vpop.f32.mrb[0].mxu0
      %v2187 = vadd.f32 0.0, %v2186
      %2188 = vmatprep.mubr.bf16.mxu0 0
      %2189 = vmatmul.mubr.bf16.gmra.mrb[0].mxu0 %v2105
      %v2190 = vpop.f32.mrb[0].mxu0
      %v2191 = vadd.f32 0.0, %v2190
      %v2192 = vpop.f32.mrb[0].mxu0
      %v2193 = vadd.f32 0.0, %v2192
      %v2194 = vpop.f32.mrb[0].mxu0
      %v2195 = vadd.f32 0.0, %v2194
      %v2196 = vpop.f32.mrb[0].mxu0
      %v2197 = vadd.f32 0.0, %v2196
      %2198 = vmatprep.mubr.bf16.mxu0 0
      %2199 = vmatmul.mubr.bf16.gmra.mrb[0].mxu0 %v2108
      %v2200 = vpop.f32.mrb[0].mxu0
      %v2201 = vadd.f32 0.0, %v2200
      %v2202 = vpop.f32.mrb[0].mxu0
      %v2203 = vadd.f32 0.0, %v2202
      %v2204 = vpop.f32.mrb[0].mxu0
      %v2205 = vadd.f32 0.0, %v2204
      %v2206 = vpop.f32.mrb[0].mxu0
      %v2207 = vadd.f32 0.0, %v2206
      %2208 = vmatprep.mubr.bf16.mxu0 0
      %2209 = vmatmul.mubr.bf16.gmra.mrb[0].mxu0 %v2111
      %v2210 = vpop.f32.mrb[0].mxu0
      %v2211 = vadd.f32 0.0, %v2210
      %v2212 = vpop.f32.mrb[0].mxu0
      %v2213 = vadd.f32 0.0, %v2212
      %v2214 = vpop.f32.mrb[0].mxu0
      %v2215 = vadd.f32 0.0, %v2214
      %v2216 = vpop.f32.mrb[0].mxu0
      %v2217 = vadd.f32 0.0, %v2216
      %2218 = vmatprep.mubr.bf16.mxu0 0
      %2219 = vmatmul.mubr.bf16.gmra.mrb[0].mxu0 %v2114
      %v2220 = vpop.f32.mrb[0].mxu0
      %v2221 = vadd.f32 0.0, %v2220
      %v2222 = vpop.f32.mrb[0].mxu0
      %v2223 = vadd.f32 0.0, %v2222
      %v2224 = vpop.f32.mrb[0].mxu0
      %v2225 = vadd.f32 0.0, %v2224
      %v2226 = vpop.f32.mrb[0].mxu0
      %v2227 = vadd.f32 0.0, %v2226
      %2228 = vdwg.mxu0
      %v2229 = vmax.f32 %v2151, 0.0
      %v2230 = vmax.f32 %v2153, 0.0
      %v2231 = vmax.f32 %v2155, 0.0
      %v2232 = vmax.f32 %v2157, 0.0
      %v2233 = vmax.f32 %v2161, 0.0
      %v2234 = vmax.f32 %v2163, 0.0
      %v2235 = vmax.f32 %v2165, 0.0
      %v2236 = vmax.f32 %v2167, 0.0
      %v2237 = vmax.f32 %v2171, 0.0
      %v2238 = vmax.f32 %v2173, 0.0
      %v2239 = vmax.f32 %v2175, 0.0
      %v2240 = vmax.f32 %v2177, 0.0
      %v2241 = vmax.f32 %v2181, 0.0
      %v2242 = vmax.f32 %v2183, 0.0
      %v2243 = vmax.f32 %v2185, 0.0
      %v2244 = vmax.f32 %v2187, 0.0
      %v2245 = vmax.f32 %v2191, 0.0
      %v2246 = vmax.f32 %v2193, 0.0
      %v2247 = vmax.f32 %v2195, 0.0
      %v2248 = vmax.f32 %v2197, 0.0
      %v2249 = vmax.f32 %v2201, 0.0
      %v2250 = vmax.f32 %v2203, 0.0
      %v2251 = vmax.f32 %v2205, 0.0
      %v2252 = vmax.f32 %v2207, 0.0
      %v2253 = vmax.f32 %v2211, 0.0
      %v2254 = vmax.f32 %v2213, 0.0
      %v2255 = vmax.f32 %v2215, 0.0
      %v2256 = vmax.f32 %v2217, 0.0
      %v2257 = vmax.f32 %v2221, 0.0
      %v2258 = vmax.f32 %v2223, 0.0
      %v2259 = vmax.f32 %v2225, 0.0
      %v2260 = vmax.f32 %v2227, 0.0
      %v2261 = vpack.c.bf16 %v2231, %v2229
      %v2262 = vpack.c.bf16 %v2232, %v2230
      %v2263 = vpack.c.bf16 %v2235, %v2233
      %v2264 = vpack.c.bf16 %v2236, %v2234
      %v2265 = vpack.c.bf16 %v2239, %v2237
      %v2266 = vpack.c.bf16 %v2240, %v2238
      %v2267 = vpack.c.bf16 %v2243, %v2241
      %v2268 = vpack.c.bf16 %v2244, %v2242
      %v2269 = vpack.c.bf16 %v2247, %v2245
      %v2270 = vpack.c.bf16 %v2248, %v2246
      %v2271 = vpack.c.bf16 %v2251, %v2249
      %v2272 = vpack.c.bf16 %v2252, %v2250
      %v2273 = vpack.c.bf16 %v2255, %v2253
      %v2274 = vpack.c.bf16 %v2256, %v2254
      %v2275 = vpack.c.bf16 %v2259, %v2257
      %v2276 = vpack.c.bf16 %v2260, %v2258
      %v2277 = vld [vmem:[%s3] sm:$0xf]
      %v2278 = vld [vmem:[%s3 + $0x4] sm:$0xf]
      %v2279 = vld [vmem:[%s3 + $0x8] sm:$0xf]
      %v2280 = vld [vmem:[%s3 + $0xc] sm:$0xf]
      %v2281 = vld [vmem:[%s3 + $0x10] sm:$0xf]
      %v2282 = vld [vmem:[%s3 + $0x14] sm:$0xf]
      %v2283 = vld [vmem:[%s3 + $0x18] sm:$0xf]
      %v2284 = vld [vmem:[%s3 + $0x1c] sm:$0xf]
      %v2285 = vld [vmem:[%s3 + $0x20] sm:$0xf]
      %v2286 = vld [vmem:[%s3 + $0x24] sm:$0xf]
      %v2287 = vld [vmem:[%s3 + $0x28] sm:$0xf]
      %v2288 = vld [vmem:[%s3 + $0x2c] sm:$0xf]
      %v2289 = vld [vmem:[%s3 + $0x30] sm:$0xf]
      %v2290 = vld [vmem:[%s3 + $0x34] sm:$0xf]
      %v2291 = vld [vmem:[%s3 + $0x38] sm:$0xf]
      %v2292 = vld [vmem:[%s3 + $0x3c] sm:$0xf]
      %v2293 = vld [vmem:[%s3 + $0x40] sm:$0xf]
      %v2294 = vld [vmem:[%s3 + $0x44] sm:$0xf]
      %v2295 = vld [vmem:[%s3 + $0x48] sm:$0xf]
      %v2296 = vld [vmem:[%s3 + $0x4c] sm:$0xf]
      %v2297 = vld [vmem:[%s3 + $0x50] sm:$0xf]
      %v2298 = vld [vmem:[%s3 + $0x54] sm:$0xf]
      %v2299 = vld [vmem:[%s3 + $0x58] sm:$0xf]
      %v2300 = vld [vmem:[%s3 + $0x5c] sm:$0xf]
      %v2301 = vld [vmem:[%s3 + $0x60] sm:$0xf]
      %v2302 = vld [vmem:[%s3 + $0x64] sm:$0xf]
      %v2303 = vld [vmem:[%s3 + $0x68] sm:$0xf]
      %v2304 = vld [vmem:[%s3 + $0x6c] sm:$0xf]
      %v2305 = vld [vmem:[%s3 + $0x70] sm:$0xf]
      %v2306 = vld [vmem:[%s3 + $0x74] sm:$0xf]
      %v2307 = vld [vmem:[%s3 + $0x78] sm:$0xf]
      %v2308 = vld [vmem:[%s3 + $0x7c] sm:$0xf]
      %v2341 = vunpack.c.l.b16 %v2277
      %v2342 = vunpack.c.l.b16 %v2278
      %v2343 = vunpack.c.l.b16 %v2279
      %v2344 = vunpack.c.l.b16 %v2280
      %v2345 = vunpack.c.l.b16 %v2281
      %v2346 = vunpack.c.l.b16 %v2282
      %v2347 = vunpack.c.l.b16 %v2283
      %v2348 = vunpack.c.l.b16 %v2284
      %v2349 = vunpack.c.l.b16 %v2285
      %v2350 = vunpack.c.l.b16 %v2286
      %v2351 = vunpack.c.l.b16 %v2287
      %v2352 = vunpack.c.l.b16 %v2288
      %v2353 = vunpack.c.l.b16 %v2289
      %v2354 = vunpack.c.l.b16 %v2290
      %v2355 = vunpack.c.l.b16 %v2291
      %v2356 = vunpack.c.l.b16 %v2292
      %v2357 = vunpack.c.l.b16 %v2293
      %v2358 = vunpack.c.l.b16 %v2294
      %v2359 = vunpack.c.l.b16 %v2295
      %v2360 = vunpack.c.l.b16 %v2296
      %v2361 = vunpack.c.l.b16 %v2297
      %v2362 = vunpack.c.l.b16 %v2298
      %v2363 = vunpack.c.l.b16 %v2299
      %v2364 = vunpack.c.l.b16 %v2300
      %v2365 = vunpack.c.l.b16 %v2301
      %v2366 = vunpack.c.l.b16 %v2302
      %v2367 = vunpack.c.l.b16 %v2303
      %v2368 = vunpack.c.l.b16 %v2304
      %v2369 = vunpack.c.l.b16 %v2305
      %v2370 = vunpack.c.l.b16 %v2306
      %v2371 = vunpack.c.l.b16 %v2307
      %v2372 = vunpack.c.l.b16 %v2308
      %v2373 = vpack.c.b16 %v2342, %v2341
      %v2374 = vpack.c.b16 %v2344, %v2343
      %v2375 = vpack.c.b16 %v2346, %v2345
      %v2376 = vpack.c.b16 %v2348, %v2347
      %v2377 = vpack.c.b16 %v2350, %v2349
      %v2378 = vpack.c.b16 %v2352, %v2351
      %v2379 = vpack.c.b16 %v2354, %v2353
      %v2380 = vpack.c.b16 %v2356, %v2355
      %v2381 = vpack.c.b16 %v2358, %v2357
      %v2382 = vpack.c.b16 %v2360, %v2359
      %v2383 = vpack.c.b16 %v2362, %v2361
      %v2384 = vpack.c.b16 %v2364, %v2363
      %v2385 = vpack.c.b16 %v2366, %v2365
      %v2386 = vpack.c.b16 %v2368, %v2367
      %v2387 = vpack.c.b16 %v2370, %v2369
      %v2388 = vpack.c.b16 %v2372, %v2371
      %2405 = vmatprep.subr.bf16.mxu0 0
      %2406 = vmatpush1.bf16.msra.mxu0 %v2373
      %2407 = vmatprep.subr.bf16.mxu0 0
      %2408 = vmatpush1.bf16.msra.mxu0 %v2374
      %2409 = vmatprep.subr.bf16.mxu0 0
      %2410 = vmatpush1.bf16.msra.mxu0 %v2375
      %2411 = vmatprep.subr.bf16.mxu0 0
      %2412 = vmatpush1.bf16.msra.mxu0 %v2376
      %2413 = vmatprep.subr.bf16.mxu0 0
      %2414 = vmatpush1.bf16.msra.mxu0 %v2377
      %2415 = vmatprep.subr.bf16.mxu0 0
      %2416 = vmatpush1.bf16.msra.mxu0 %v2378
      %2417 = vmatprep.subr.bf16.mxu0 0
      %2418 = vmatpush1.bf16.msra.mxu0 %v2379
      %2419 = vmatprep.subr.bf16.mxu0 0
      %2420 = vmatpush1.bf16.msra.mxu0 %v2380
      %2421 = vmatprep.subr.bf16.mxu0 0
      %2422 = vmatpush1.bf16.msra.mxu0 %v2381
      %2423 = vmatprep.subr.bf16.mxu0 0
      %2424 = vmatpush1.bf16.msra.mxu0 %v2382
      %2425 = vmatprep.subr.bf16.mxu0 0
      %2426 = vmatpush1.bf16.msra.mxu0 %v2383
      %2427 = vmatprep.subr.bf16.mxu0 0
      %2428 = vmatpush1.bf16.msra.mxu0 %v2384
      %2429 = vmatprep.subr.bf16.mxu0 0
      %2430 = vmatpush1.bf16.msra.mxu0 %v2385
      %2431 = vmatprep.subr.bf16.mxu0 0
      %2432 = vmatpush1.bf16.msra.mxu0 %v2386
      %2433 = vmatprep.subr.bf16.mxu0 0
      %2434 = vmatpush1.bf16.msra.mxu0 %v2387
      %2435 = vmatprep.subr.bf16.mxu0 0
      %2436 = vmatpush1.bf16.msra.mxu0 %v2388
      %2437 = vmatprep.mubr.bf16.mxu0 %v2262
      %2438 = vmatmul.mubr.bf16.gmra.mrb[0].mxu0 %v2261
      %v2439 = vpop.f32.mrb[0].mxu0
      %v2440 = vadd.f32 0.0, %v2439
      %v2441 = vpop.f32.mrb[0].mxu0
      %v2442 = vpop.f32.mrb[0].mxu0
      %v2443 = vadd.f32 0.0, %v2442
      %v2444 = vpop.f32.mrb[0].mxu0
      %2445 = vmatprep.mubr.bf16.mxu0 %v2264
      %2446 = vmatmul.mubr.bf16.gmra.mrb[0].mxu0 %v2263
      %v2447 = vpop.f32.mrb[0].mxu0
      %v2448 = vadd.f32 0.0, %v2447
      %v2449 = vpop.f32.mrb[0].mxu0
      %v2450 = vpop.f32.mrb[0].mxu0
      %v2451 = vadd.f32 0.0, %v2450
      %v2452 = vpop.f32.mrb[0].mxu0
      %2453 = vmatprep.mubr.bf16.mxu0 %v2266
      %2454 = vmatmul.mubr.bf16.gmra.mrb[0].mxu0 %v2265
      %v2455 = vpop.f32.mrb[0].mxu0
      %v2456 = vadd.f32 0.0, %v2455
      %v2457 = vpop.f32.mrb[0].mxu0
      %v2458 = vpop.f32.mrb[0].mxu0
      %v2459 = vadd.f32 0.0, %v2458
      %v2460 = vpop.f32.mrb[0].mxu0
      %2461 = vmatprep.mubr.bf16.mxu0 %v2268
      %2462 = vmatmul.mubr.bf16.gmra.mrb[0].mxu0 %v2267
      %v2463 = vpop.f32.mrb[0].mxu0
      %v2464 = vadd.f32 0.0, %v2463
      %v2465 = vpop.f32.mrb[0].mxu0
      %v2466 = vpop.f32.mrb[0].mxu0
      %v2467 = vadd.f32 0.0, %v2466
      %v2468 = vpop.f32.mrb[0].mxu0
      %2469 = vmatprep.mubr.bf16.mxu0 %v2270
      %2470 = vmatmul.mubr.bf16.gmra.mrb[0].mxu0 %v2269
      %v2471 = vpop.f32.mrb[0].mxu0
      %v2472 = vadd.f32 0.0, %v2471
      %v2473 = vpop.f32.mrb[0].mxu0
      %v2474 = vpop.f32.mrb[0].mxu0
      %v2475 = vadd.f32 0.0, %v2474
      %v2476 = vpop.f32.mrb[0].mxu0
      %2477 = vmatprep.mubr.bf16.mxu0 %v2272
      %2478 = vmatmul.mubr.bf16.gmra.mrb[0].mxu0 %v2271
      %v2479 = vpop.f32.mrb[0].mxu0
      %v2480 = vadd.f32 0.0, %v2479
      %v2481 = vpop.f32.mrb[0].mxu0
      %v2482 = vpop.f32.mrb[0].mxu0
      %v2483 = vadd.f32 0.0, %v2482
      %v2484 = vpop.f32.mrb[0].mxu0
      %2485 = vmatprep.mubr.bf16.mxu0 %v2274
      %2486 = vmatmul.mubr.bf16.gmra.mrb[0].mxu0 %v2273
      %v2487 = vpop.f32.mrb[0].mxu0
      %v2488 = vadd.f32 0.0, %v2487
      %v2489 = vpop.f32.mrb[0].mxu0
      %v2490 = vpop.f32.mrb[0].mxu0
      %v2491 = vadd.f32 0.0, %v2490
      %v2492 = vpop.f32.mrb[0].mxu0
      %2493 = vmatprep.mubr.bf16.mxu0 %v2276
      %2494 = vmatmul.mubr.bf16.gmra.mrb[0].mxu0 %v2275
      %v2495 = vpop.f32.mrb[0].mxu0
      %v2496 = vadd.f32 0.0, %v2495
      %v2497 = vpop.f32.mrb[0].mxu0
      %v2498 = vpop.f32.mrb[0].mxu0
      %v2499 = vadd.f32 0.0, %v2498
      %v2500 = vpop.f32.mrb[0].mxu0
      %2501 = vdwg.mxu0
      %vm2502 = vcmask 244736
      %2503 = vst.msk [vmem:[%s199] sm:$0xff] %vm2502, %v2440
      %2504 = vst.msk [vmem:[%s199 + $0x8] sm:$0xff] %vm2502, %v2443
      %2505 = vst.msk [vmem:[%s199 + $0x10] sm:$0xff] %vm2502, %v2448
      %2506 = vst.msk [vmem:[%s199 + $0x18] sm:$0xff] %vm2502, %v2451
      %2507 = vst.msk [vmem:[%s199 + $0x20] sm:$0xff] %vm2502, %v2456
      %2508 = vst.msk [vmem:[%s199 + $0x28] sm:$0xff] %vm2502, %v2459
      %2509 = vst.msk [vmem:[%s199 + $0x30] sm:$0xff] %vm2502, %v2464
      %2510 = vst.msk [vmem:[%s199 + $0x38] sm:$0xff] %vm2502, %v2467
      %2511 = vst.msk [vmem:[%s199 + $0x40] sm:$0xff] %vm2502, %v2472
      %2512 = vst.msk [vmem:[%s199 + $0x48] sm:$0xff] %vm2502, %v2475
      %2513 = vst.msk [vmem:[%s199 + $0x50] sm:$0xff] %vm2502, %v2480
      %2514 = vst.msk [vmem:[%s199 + $0x58] sm:$0xff] %vm2502, %v2483
      %2515 = vst.msk [vmem:[%s199 + $0x60] sm:$0xff] %vm2502, %v2488
      %2516 = vst.msk [vmem:[%s199 + $0x68] sm:$0xff] %vm2502, %v2491
      %2517 = vst.msk [vmem:[%s199 + $0x70] sm:$0xff] %vm2502, %v2496
      %2518 = vst.msk [vmem:[%s199 + $0x78] sm:$0xff] %vm2502, %v2499
      %s2519 = smul.u32 16, %s15
      %p2520 = scmp.lt.s32.totalorder %s2519, 31
      %s2521 = scalar_select %p2520, %s2519, 31
      %s2522 = smul.addr %s2521, 8
      %s2523 = scalar_lea.vmem %s4, %s2522
      // Predicated region
      $region37: #{tpu_custom_call.1} parent=35 // pred_check
        %p2524 = pneg %p122
      $region38: #{tpu_custom_call.1} parent=35 // pred_check_branch
        %2526 = sbr.rel (%p2524) target = $region40
      $region39: #{tpu_custom_call.1} parent=35 // pred_region
        %s2527 = smul.u32 16, %s15
      $region40: #{tpu_custom_call.1} parent=35 // pred_fallthru
        _
    $region36: #{tpu_custom_call.1} parent=5 // pred_fallthru
      _
    %p2528 = scmp.le.s32.totalorder 2, %s10
    // Predicated region
    $region41: #{tpu_custom_call.1} parent=5 // pred_check
      %p2529 = pneg %p2528
    $region42: #{tpu_custom_call.1} parent=5 // pred_check_branch
      %2531 = sbr.rel (%p2529) target = $region44
    $region43: #{tpu_custom_call.1} parent=5 // pred_region
      %s2532 = ssub.s32 %s10, 2
      // Predicated region
      $region45: #{tpu_custom_call.1} parent=43 // pred_check
        %p2533 = pneg %p128
      $region46: #{tpu_custom_call.1} parent=43 // pred_check_branch
        %2535 = sbr.rel (%p2533) target = $region48
      $region47: #{tpu_custom_call.1} parent=43 // pred_region
        %s2536 = smul.u32 16, %s16
        %p2537 = scmp.lt.s32.totalorder %s2536, 31
        %s2538 = scalar_select %p2537, %s2536, 31
        %s2539 = smul.addr %s2538, 8
        %s2540 = scalar_lea.vmem %s4, %s2539
      $region48: #{tpu_custom_call.1} parent=43 // pred_fallthru
        _
    $region44: #{tpu_custom_call.1} parent=5 // pred_fallthru
      _
  $region6: #{tpu_custom_call.1} parent=0 // loop_footer
    %s14 = sadd.s32 1, %s10
  $region7: #{tpu_custom_call.1} parent=0 // loop_footer_branch
    %9 = sbr.rel target = $region3
  $region8: #{tpu_custom_call.1} parent=0 // loop_exit
    _

</llo_original>
